<compile_context>
chip_gen: v6e
topology: v6e:2x2x1
jax: 0.10.0
libtpu: 0.0.40
codegen_flags: <defaults>
</compile_context>

<pallas_src>
import functools

import jax
import jax.numpy as jnp
from jax.experimental import pallas as pl
from jax.experimental.pallas import tpu as pltpu

LANE = 128


def _round_up(n, m):
    return ((n + m - 1) // m) * m


def mlp_complex_kernel(x_ref, w0_ref, b0_ref, w1_ref, b1_ref, w2_ref, b2_ref,
                       o_ref):
    """One batch tile: 3 bf16 MXU matmuls (f32 accumulation) + 2 f32 tanh."""
    h = jnp.tanh(
        jnp.dot(x_ref[...], w0_ref[...], preferred_element_type=jnp.float32)
        + b0_ref[...])
    h = jnp.tanh(
        jnp.dot(h.astype(jnp.bfloat16), w1_ref[...],
                preferred_element_type=jnp.float32)
        + b1_ref[...])
    y = (jnp.dot(h.astype(jnp.bfloat16), w2_ref[...],
                 preferred_element_type=jnp.float32)
         + b2_ref[...])
    o_ref[...] = y.astype(o_ref.dtype)


def _prep_params(params):
    """Zero-pad hidden width to 128 lanes; weights bf16, biases f32.

    Zero padding keeps the math exact: padded hidden columns stay
    tanh(0 + 0) = 0 and padded weight rows are 0, so they never contribute
    to real outputs. The output width (2*output_dim) is NOT padded.
    """
    w0, b0, w1, b1, w2, b2 = params
    input_dim, hidden = w0.shape
    out2 = w2.shape[1]
    hid_p = _round_up(hidden, LANE)
    bf16, f32 = jnp.bfloat16, jnp.float32
    w0p = jnp.zeros((input_dim, hid_p), bf16).at[:, :hidden].set(w0.astype(bf16))
    b0p = jnp.zeros((1, hid_p), f32).at[:, :hidden].set(b0.astype(f32))
    w1p = jnp.zeros((hid_p, hid_p), bf16).at[:hidden, :hidden].set(w1.astype(bf16))
    b1p = jnp.zeros((1, hid_p), f32).at[:, :hidden].set(b1.astype(f32))
    w2p = jnp.zeros((hid_p, out2), bf16).at[:hidden, :].set(w2.astype(bf16))
    b2p = b2.astype(f32).reshape(1, out2)
    return (w0p, b0p, w1p, b1p, w2p, b2p), out2


@functools.partial(jax.jit, static_argnames=("block_batch",))
def mlp_complex_forward(x, params, *, block_batch=512):
    """params = (w0, b0, w1, b1, w2, b2), w_i stored (in, out), b_i (1, out)."""
    (w0, b0, w1, b1, w2, b2), out2 = _prep_params(params)
    batch, input_dim = x.shape
    hid_p = w0.shape[1]
    output_dim = out2 // 2
    x = x.astype(jnp.bfloat16)

    # Batch tile: multiple of 16 (bf16 sublane packing). Pad the tail so every
    # grid step is a full tile (VMEM OOB is unchecked on TPU).
    tb = _round_up(min(block_batch, max(batch, 16)), 16)
    # Ensure >= 2 grid steps whenever the batch allows it so the "parallel"
    # batch axis occupies both TensorCores on v7x.
    if batch > 16 and _round_up(batch, tb) // tb < 2:
        tb = _round_up(pl.cdiv(batch, 2), 16)
    batch_p = _round_up(batch, tb)
    if batch_p != batch:
        x = jnp.pad(x, ((0, batch_p - batch), (0, 0)))
    grid = (batch_p // tb,)

    def full_block(shape):
        # Constant index map -> DMA'd once, VMEM-resident across grid steps.
        return pl.BlockSpec(shape, lambda i: (0, 0))

    flops = 2 * batch_p * (input_dim * hid_p + hid_p * hid_p + hid_p * out2)
    transcendentals = 2 * batch_p * hid_p
    weight_bytes = (2 * (w0.size + w1.size + w2.size)
                    + 4 * (b0.size + b1.size + b2.size))
    bytes_accessed = (batch_p * input_dim * 2      # bf16 x stream
                      + batch_p * out2 * 4         # f32 output (unpadded)
                      + weight_bytes)

    y = pl.pallas_call(
        mlp_complex_kernel,
        grid=grid,
        in_specs=[
            pl.BlockSpec((tb, input_dim), lambda i: (i, 0)),   # x: streamed
            full_block(w0.shape), full_block(b0.shape),
            full_block(w1.shape), full_block(b1.shape),
            full_block(w2.shape), full_block(b2.shape),
        ],
        out_specs=pl.BlockSpec((tb, out2), lambda i: (i, 0)),
        out_shape=jax.ShapeDtypeStruct((batch_p, out2), jnp.float32),
        compiler_params=pltpu.CompilerParams(
            dimension_semantics=("parallel",),     # both TCs on v7x
        ),
        cost_estimate=pl.CostEstimate(
            flops=flops,
            transcendentals=transcendentals,
            bytes_accessed=bytes_accessed,
        ),
    )(x, w0, b0, w1, b1, w2, b2)

    # Trim batch padding, then complex assembly (y[:, :d] + 1j*y[:, d:]).
    y = y[:batch]
    return jax.lax.complex(y[:, :output_dim], y[:, output_dim:])


def init_params(key, input_dim, output_dim, hidden_dim):
    """Deterministic synthetic parameters matching MLPComplex's shapes.

    Torch shapes: W0 (hidden, input), W1 (hidden, hidden), W2 (2*out, hidden).
    Stored transposed (in, out) for the kernel.
    """
    k0, k1, k2, k3, k4, k5 = jax.random.split(key, 6)
    out2 = 2 * output_dim
    s0 = 1.0 / jnp.sqrt(input_dim)
    s1 = 1.0 / jnp.sqrt(hidden_dim)
    w0 = jax.random.uniform(k0, (input_dim, hidden_dim), jnp.float32, -s0, s0)
    b0 = jax.random.uniform(k1, (1, hidden_dim), jnp.float32, -s0, s0)
    w1 = jax.random.uniform(k2, (hidden_dim, hidden_dim), jnp.float32, -s1, s1)
    b1 = jax.random.uniform(k3, (1, hidden_dim), jnp.float32, -s1, s1)
    w2 = jax.random.uniform(k4, (hidden_dim, out2), jnp.float32, -s1, s1)
    b2 = jax.random.uniform(k5, (1, out2), jnp.float32, -s1, s1)
    return (w0, b0, w1, b1, w2, b2)


def reference_forward(x, params):
    """Pure-JAX f32 reference of the same math (unpadded params)."""
    w0, b0, w1, b1, w2, b2 = params
    xf = x.astype(jnp.float32)
    h = jnp.tanh(xf @ w0 + b0)
    h = jnp.tanh(h @ w1 + b1)
    y = h @ w2 + b2
    d = y.shape[1] // 2
    return y[:, :d] + 1j * y[:, d:]


if __name__ == "__main__":
    # Shapes consistent with MLPComplex(input_dim=16, output_dim=8, hidden_dim=32).
    # batch=1000 with block_batch=512 exercises a 2-step parallel grid + tail pad.
    batch, input_dim, output_dim, hidden_dim = 1000, 16, 8, 32

    key = jax.random.PRNGKey(0)
    kx, kp = jax.random.split(key)
    # Activations streamed in bf16 (as an upstream producer would emit them).
    x = jax.random.normal(kx, (batch, input_dim), jnp.float32).astype(jnp.bfloat16)
    params = init_params(kp, input_dim, output_dim, hidden_dim)

    out = jax.block_until_ready(mlp_complex_forward(x, params, block_batch=512))
    ref = reference_forward(x, params)

    assert out.shape == (batch, output_dim), out.shape
    assert out.dtype == jnp.complex64, out.dtype
    # bf16 MXU operands (weights + inter-layer activations) -> looser tolerance
    # than the pure-f32 path.
    assert jnp.allclose(out, ref, atol=5e-2, rtol=5e-2)

    print("KERNEL_OK")
</pallas_src>

<mosaic_0001>
module attributes {stable_mosaic.version = 11 : i64} {
  func.func @mlp_complex_kernel(%arg0: i32, %arg1: memref<512x16xbf16, #tpu.memory_space<vmem>>, %arg2: memref<16x128xbf16, #tpu.memory_space<vmem>>, %arg3: memref<1x128xf32, #tpu.memory_space<vmem>>, %arg4: memref<128x128xbf16, #tpu.memory_space<vmem>>, %arg5: memref<1x128xf32, #tpu.memory_space<vmem>>, %arg6: memref<128x16xbf16, #tpu.memory_space<vmem>>, %arg7: memref<1x16xf32, #tpu.memory_space<vmem>>, %arg8: memref<512x16xf32, #tpu.memory_space<vmem>>) attributes {dimension_semantics = [#tpu.dimension_semantics<parallel>], iteration_bounds = array<i64: 2>, scalar_prefetch = 0 : i64, scratch_operands = 0 : i64, tpu.core_type = #tpu.core_type<tc>, window_params = [{transform_indices = @transform_0, window_bounds = array<i64: 512, 16>}, {pipeline_mode = #tpu.pipeline_mode<synchronous>, transform_indices = @transform_1, window_bounds = array<i64: 16, 128>}, {pipeline_mode = #tpu.pipeline_mode<synchronous>, transform_indices = @transform_2, window_bounds = array<i64: 1, 128>}, {pipeline_mode = #tpu.pipeline_mode<synchronous>, transform_indices = @transform_3, window_bounds = array<i64: 128, 128>}, {pipeline_mode = #tpu.pipeline_mode<synchronous>, transform_indices = @transform_4, window_bounds = array<i64: 1, 128>}, {pipeline_mode = #tpu.pipeline_mode<synchronous>, transform_indices = @transform_5, window_bounds = array<i64: 128, 16>}, {pipeline_mode = #tpu.pipeline_mode<synchronous>, transform_indices = @transform_6, window_bounds = array<i64: 1, 16>}, {transform_indices = @transform_7, window_bounds = array<i64: 512, 16>}]} {
    %c0 = arith.constant 0 : index
    %c0_0 = arith.constant 0 : index
    %0 = vector.load %arg1[%c0, %c0_0] : memref<512x16xbf16, #tpu.memory_space<vmem>>, vector<512x16xbf16>
    %c0_1 = arith.constant 0 : index
    %c0_2 = arith.constant 0 : index
    %1 = vector.load %arg2[%c0_1, %c0_2] : memref<16x128xbf16, #tpu.memory_space<vmem>>, vector<16x128xbf16>
    %cst = arith.constant dense<0.000000e+00> : vector<512x128xf32>
    %2 = tpu.matmul %0, %1, %cst {dimension_numbers = #tpu.dot_dimension_numbers<[1], [0], [0], [1], [0, 0, 1, 1], [], []>} : vector<512x16xbf16>, vector<16x128xbf16>, vector<512x128xf32> -> vector<512x128xf32>
    %c0_3 = arith.constant 0 : index
    %c0_4 = arith.constant 0 : index
    %3 = vector.load %arg3[%c0_3, %c0_4] : memref<1x128xf32, #tpu.memory_space<vmem>>, vector<1x128xf32>
    %4 = vector.broadcast %3 : vector<1x128xf32> to vector<512x128xf32>
    %5 = arith.addf %2, %4 : vector<512x128xf32>
    %6 = math.tanh %5 : vector<512x128xf32>
    %7 = arith.truncf %6 : vector<512x128xf32> to vector<512x128xbf16>
    %c0_5 = arith.constant 0 : index
    %c0_6 = arith.constant 0 : index
    %8 = vector.load %arg4[%c0_5, %c0_6] : memref<128x128xbf16, #tpu.memory_space<vmem>>, vector<128x128xbf16>
    %cst_7 = arith.constant dense<0.000000e+00> : vector<512x128xf32>
    %9 = tpu.matmul %7, %8, %cst_7 {dimension_numbers = #tpu.dot_dimension_numbers<[1], [0], [0], [1], [0, 0, 1, 1], [], []>} : vector<512x128xbf16>, vector<128x128xbf16>, vector<512x128xf32> -> vector<512x128xf32>
    %c0_8 = arith.constant 0 : index
    %c0_9 = arith.constant 0 : index
    %10 = vector.load %arg5[%c0_8, %c0_9] : memref<1x128xf32, #tpu.memory_space<vmem>>, vector<1x128xf32>
    %11 = vector.broadcast %10 : vector<1x128xf32> to vector<512x128xf32>
    %12 = arith.addf %9, %11 : vector<512x128xf32>
    %13 = math.tanh %12 : vector<512x128xf32>
    %14 = arith.truncf %13 : vector<512x128xf32> to vector<512x128xbf16>
    %c0_10 = arith.constant 0 : index
    %c0_11 = arith.constant 0 : index
    %15 = vector.load %arg6[%c0_10, %c0_11] : memref<128x16xbf16, #tpu.memory_space<vmem>>, vector<128x16xbf16>
    %cst_12 = arith.constant dense<0.000000e+00> : vector<512x16xf32>
    %16 = tpu.matmul %14, %15, %cst_12 {dimension_numbers = #tpu.dot_dimension_numbers<[1], [0], [0], [1], [0, 0, 1, 1], [], []>} : vector<512x128xbf16>, vector<128x16xbf16>, vector<512x16xf32> -> vector<512x16xf32>
    %c0_13 = arith.constant 0 : index
    %c0_14 = arith.constant 0 : index
    %17 = vector.load %arg7[%c0_13, %c0_14] : memref<1x16xf32, #tpu.memory_space<vmem>>, vector<1x16xf32>
    %18 = vector.broadcast %17 : vector<1x16xf32> to vector<512x16xf32>
    %19 = arith.addf %16, %18 : vector<512x16xf32>
    %c0_15 = arith.constant 0 : index
    %c0_16 = arith.constant 0 : index
    %20 = vector.load %arg8[%c0_15, %c0_16] : memref<512x16xf32, #tpu.memory_space<vmem>>, vector<512x16xf32>
    tpu.vector_store %arg8[%c0_15, %c0_16], %19 {strides = array<i32>} : memref<512x16xf32, #tpu.memory_space<vmem>>, vector<512x16xf32>,
    return
  }
  func.func @transform_0(%arg0: i32) -> (i32, i32) {
    %c0_i32 = arith.constant 0 : i32
    %c0_i32_0 = arith.constant 0 : i32
    return %arg0, %c0_i32 : i32, i32
  }
  func.func @transform_1(%arg0: i32) -> (i32, i32) {
    %c0_i32 = arith.constant 0 : i32
    %c0_i32_0 = arith.constant 0 : i32
    %c0_i32_1 = arith.constant 0 : i32
    return %c0_i32, %c0_i32_0 : i32, i32
  }
  func.func @transform_2(%arg0: i32) -> (i32, i32) {
    %c0_i32 = arith.constant 0 : i32
    %c0_i32_0 = arith.constant 0 : i32
    %c0_i32_1 = arith.constant 0 : i32
    return %c0_i32, %c0_i32_0 : i32, i32
  }
  func.func @transform_3(%arg0: i32) -> (i32, i32) {
    %c0_i32 = arith.constant 0 : i32
    %c0_i32_0 = arith.constant 0 : i32
    %c0_i32_1 = arith.constant 0 : i32
    return %c0_i32, %c0_i32_0 : i32, i32
  }
  func.func @transform_4(%arg0: i32) -> (i32, i32) {
    %c0_i32 = arith.constant 0 : i32
    %c0_i32_0 = arith.constant 0 : i32
    %c0_i32_1 = arith.constant 0 : i32
    return %c0_i32, %c0_i32_0 : i32, i32
  }
  func.func @transform_5(%arg0: i32) -> (i32, i32) {
    %c0_i32 = arith.constant 0 : i32
    %c0_i32_0 = arith.constant 0 : i32
    %c0_i32_1 = arith.constant 0 : i32
    return %c0_i32, %c0_i32_0 : i32, i32
  }
  func.func @transform_6(%arg0: i32) -> (i32, i32) {
    %c0_i32 = arith.constant 0 : i32
    %c0_i32_0 = arith.constant 0 : i32
    %c0_i32_1 = arith.constant 0 : i32
    return %c0_i32, %c0_i32_0 : i32, i32
  }
  func.func @transform_7(%arg0: i32) -> (i32, i32) {
    %c0_i32 = arith.constant 0 : i32
    %c0_i32_0 = arith.constant 0 : i32
    return %arg0, %c0_i32 : i32, i32
  }
}

</mosaic_0001>

<llo_original>
// kernel: custom-call
$region0: #{custom-call}
  %s0 = inlined_call_operand.vmem [shape: f32[1000,8], index: 0, kind: input, shape index: {}]
  %s1 = inlined_call_operand.vmem [shape: f32[1000,8], index: 1, kind: input, shape index: {}]
  %s2 = inlined_call_operand.vmem [shape: c64[1000,8], index: 2, kind: output, shape index: {}]
  %s4 = scalar_lea.vmem %s2, 1000
  %v5 = vld [vmem:[%s0] sm:$0xff]
  %6 = vst [vmem:[%s2] sm:$0xff] %v5
  %s7 = scalar_lea.vmem %s2, 8
  %s8 = scalar_lea.vmem %s0, 8
  %v9 = vld [vmem:[%s8] sm:$0xff]
  %10 = vst [vmem:[%s7] sm:$0xff] %v9
  %s11 = scalar_lea.vmem %s2, 16
  %s12 = scalar_lea.vmem %s0, 16
  %v13 = vld [vmem:[%s12] sm:$0xff]
  %14 = vst [vmem:[%s11] sm:$0xff] %v13
  %s15 = scalar_lea.vmem %s2, 24
  %s16 = scalar_lea.vmem %s0, 24
  %v17 = vld [vmem:[%s16] sm:$0xff]
  %18 = vst [vmem:[%s15] sm:$0xff] %v17
  %s19 = scalar_lea.vmem %s2, 32
  %s20 = scalar_lea.vmem %s0, 32
  %v21 = vld [vmem:[%s20] sm:$0xff]
  %22 = vst [vmem:[%s19] sm:$0xff] %v21
  %s23 = scalar_lea.vmem %s2, 40
  %s24 = scalar_lea.vmem %s0, 40
  %v25 = vld [vmem:[%s24] sm:$0xff]
  %26 = vst [vmem:[%s23] sm:$0xff] %v25
  %s27 = scalar_lea.vmem %s2, 48
  %s28 = scalar_lea.vmem %s0, 48
  %v29 = vld [vmem:[%s28] sm:$0xff]
  %30 = vst [vmem:[%s27] sm:$0xff] %v29
  %s31 = scalar_lea.vmem %s2, 56
  %s32 = scalar_lea.vmem %s0, 56
  %v33 = vld [vmem:[%s32] sm:$0xff]
  %34 = vst [vmem:[%s31] sm:$0xff] %v33
  %s35 = scalar_lea.vmem %s2, 64
  %s36 = scalar_lea.vmem %s0, 64
  %v37 = vld [vmem:[%s36] sm:$0xff]
  %38 = vst [vmem:[%s35] sm:$0xff] %v37
  %s39 = scalar_lea.vmem %s2, 72
  %s40 = scalar_lea.vmem %s0, 72
  %v41 = vld [vmem:[%s40] sm:$0xff]
  %42 = vst [vmem:[%s39] sm:$0xff] %v41
  %s43 = scalar_lea.vmem %s2, 80
  %s44 = scalar_lea.vmem %s0, 80
  %v45 = vld [vmem:[%s44] sm:$0xff]
  %46 = vst [vmem:[%s43] sm:$0xff] %v45
  %s47 = scalar_lea.vmem %s2, 88
  %s48 = scalar_lea.vmem %s0, 88
  %v49 = vld [vmem:[%s48] sm:$0xff]
  %50 = vst [vmem:[%s47] sm:$0xff] %v49
  %s51 = scalar_lea.vmem %s2, 96
  %s52 = scalar_lea.vmem %s0, 96
  %v53 = vld [vmem:[%s52] sm:$0xff]
  %54 = vst [vmem:[%s51] sm:$0xff] %v53
  %s55 = scalar_lea.vmem %s2, 104
  %s56 = scalar_lea.vmem %s0, 104
  %v57 = vld [vmem:[%s56] sm:$0xff]
  %58 = vst [vmem:[%s55] sm:$0xff] %v57
  %s59 = scalar_lea.vmem %s2, 112
  %s60 = scalar_lea.vmem %s0, 112
  %v61 = vld [vmem:[%s60] sm:$0xff]
  %62 = vst [vmem:[%s59] sm:$0xff] %v61
  %s63 = scalar_lea.vmem %s2, 120
  %s64 = scalar_lea.vmem %s0, 120
  %v65 = vld [vmem:[%s64] sm:$0xff]
  %66 = vst [vmem:[%s63] sm:$0xff] %v65
  %s67 = scalar_lea.vmem %s2, 128
  %s68 = scalar_lea.vmem %s0, 128
  %v69 = vld [vmem:[%s68] sm:$0xff]
  %70 = vst [vmem:[%s67] sm:$0xff] %v69
  %s71 = scalar_lea.vmem %s2, 136
  %s72 = scalar_lea.vmem %s0, 136
  %v73 = vld [vmem:[%s72] sm:$0xff]
  %74 = vst [vmem:[%s71] sm:$0xff] %v73
  %s75 = scalar_lea.vmem %s2, 144
  %s76 = scalar_lea.vmem %s0, 144
  %v77 = vld [vmem:[%s76] sm:$0xff]
  %78 = vst [vmem:[%s75] sm:$0xff] %v77
  %s79 = scalar_lea.vmem %s2, 152
  %s80 = scalar_lea.vmem %s0, 152
  %v81 = vld [vmem:[%s80] sm:$0xff]
  %82 = vst [vmem:[%s79] sm:$0xff] %v81
  %s83 = scalar_lea.vmem %s2, 160
  %s84 = scalar_lea.vmem %s0, 160
  %v85 = vld [vmem:[%s84] sm:$0xff]
  %86 = vst [vmem:[%s83] sm:$0xff] %v85
  %s87 = scalar_lea.vmem %s2, 168
  %s88 = scalar_lea.vmem %s0, 168
  %v89 = vld [vmem:[%s88] sm:$0xff]
  %90 = vst [vmem:[%s87] sm:$0xff] %v89
  %s91 = scalar_lea.vmem %s2, 176
  %s92 = scalar_lea.vmem %s0, 176
  %v93 = vld [vmem:[%s92] sm:$0xff]
  %94 = vst [vmem:[%s91] sm:$0xff] %v93
  %s95 = scalar_lea.vmem %s2, 184
  %s96 = scalar_lea.vmem %s0, 184
  %v97 = vld [vmem:[%s96] sm:$0xff]
  %98 = vst [vmem:[%s95] sm:$0xff] %v97
  %s99 = scalar_lea.vmem %s2, 192
  %s100 = scalar_lea.vmem %s0, 192
  %v101 = vld [vmem:[%s100] sm:$0xff]
  %102 = vst [vmem:[%s99] sm:$0xff] %v101
  %s103 = scalar_lea.vmem %s2, 200
  %s104 = scalar_lea.vmem %s0, 200
  %v105 = vld [vmem:[%s104] sm:$0xff]
  %106 = vst [vmem:[%s103] sm:$0xff] %v105
  %s107 = scalar_lea.vmem %s2, 208
  %s108 = scalar_lea.vmem %s0, 208
  %v109 = vld [vmem:[%s108] sm:$0xff]
  %110 = vst [vmem:[%s107] sm:$0xff] %v109
  %s111 = scalar_lea.vmem %s2, 216
  %s112 = scalar_lea.vmem %s0, 216
  %v113 = vld [vmem:[%s112] sm:$0xff]
  %114 = vst [vmem:[%s111] sm:$0xff] %v113
  %s115 = scalar_lea.vmem %s2, 224
  %s116 = scalar_lea.vmem %s0, 224
  %v117 = vld [vmem:[%s116] sm:$0xff]
  %118 = vst [vmem:[%s115] sm:$0xff] %v117
  %s119 = scalar_lea.vmem %s2, 232
  %s120 = scalar_lea.vmem %s0, 232
  %v121 = vld [vmem:[%s120] sm:$0xff]
  %122 = vst [vmem:[%s119] sm:$0xff] %v121
  %s123 = scalar_lea.vmem %s2, 240
  %s124 = scalar_lea.vmem %s0, 240
  %v125 = vld [vmem:[%s124] sm:$0xff]
  %126 = vst [vmem:[%s123] sm:$0xff] %v125
  %s127 = scalar_lea.vmem %s2, 248
  %s128 = scalar_lea.vmem %s0, 248
  %v129 = vld [vmem:[%s128] sm:$0xff]
  %130 = vst [vmem:[%s127] sm:$0xff] %v129
  %s131 = scalar_lea.vmem %s2, 256
  %s132 = scalar_lea.vmem %s0, 256
  %v133 = vld [vmem:[%s132] sm:$0xff]
  %134 = vst [vmem:[%s131] sm:$0xff] %v133
  %s135 = scalar_lea.vmem %s2, 264
  %s136 = scalar_lea.vmem %s0, 264
  %v137 = vld [vmem:[%s136] sm:$0xff]
  %138 = vst [vmem:[%s135] sm:$0xff] %v137
  %s139 = scalar_lea.vmem %s2, 272
  %s140 = scalar_lea.vmem %s0, 272
  %v141 = vld [vmem:[%s140] sm:$0xff]
  %142 = vst [vmem:[%s139] sm:$0xff] %v141
  %s143 = scalar_lea.vmem %s2, 280
  %s144 = scalar_lea.vmem %s0, 280
  %v145 = vld [vmem:[%s144] sm:$0xff]
  %146 = vst [vmem:[%s143] sm:$0xff] %v145
  %s147 = scalar_lea.vmem %s2, 288
  %s148 = scalar_lea.vmem %s0, 288
  %v149 = vld [vmem:[%s148] sm:$0xff]
  %150 = vst [vmem:[%s147] sm:$0xff] %v149
  %s151 = scalar_lea.vmem %s2, 296
  %s152 = scalar_lea.vmem %s0, 296
  %v153 = vld [vmem:[%s152] sm:$0xff]
  %154 = vst [vmem:[%s151] sm:$0xff] %v153
  %s155 = scalar_lea.vmem %s2, 304
  %s156 = scalar_lea.vmem %s0, 304
  %v157 = vld [vmem:[%s156] sm:$0xff]
  %158 = vst [vmem:[%s155] sm:$0xff] %v157
  %s159 = scalar_lea.vmem %s2, 312
  %s160 = scalar_lea.vmem %s0, 312
  %v161 = vld [vmem:[%s160] sm:$0xff]
  %162 = vst [vmem:[%s159] sm:$0xff] %v161
  %s163 = scalar_lea.vmem %s2, 320
  %s164 = scalar_lea.vmem %s0, 320
  %v165 = vld [vmem:[%s164] sm:$0xff]
  %166 = vst [vmem:[%s163] sm:$0xff] %v165
  %s167 = scalar_lea.vmem %s2, 328
  %s168 = scalar_lea.vmem %s0, 328
  %v169 = vld [vmem:[%s168] sm:$0xff]
  %170 = vst [vmem:[%s167] sm:$0xff] %v169
  %s171 = scalar_lea.vmem %s2, 336
  %s172 = scalar_lea.vmem %s0, 336
  %v173 = vld [vmem:[%s172] sm:$0xff]
  %174 = vst [vmem:[%s171] sm:$0xff] %v173
  %s175 = scalar_lea.vmem %s2, 344
  %s176 = scalar_lea.vmem %s0, 344
  %v177 = vld [vmem:[%s176] sm:$0xff]
  %178 = vst [vmem:[%s175] sm:$0xff] %v177
  %s179 = scalar_lea.vmem %s2, 352
  %s180 = scalar_lea.vmem %s0, 352
  %v181 = vld [vmem:[%s180] sm:$0xff]
  %182 = vst [vmem:[%s179] sm:$0xff] %v181
  %s183 = scalar_lea.vmem %s2, 360
  %s184 = scalar_lea.vmem %s0, 360
  %v185 = vld [vmem:[%s184] sm:$0xff]
  %186 = vst [vmem:[%s183] sm:$0xff] %v185
  %s187 = scalar_lea.vmem %s2, 368
  %s188 = scalar_lea.vmem %s0, 368
  %v189 = vld [vmem:[%s188] sm:$0xff]
  %190 = vst [vmem:[%s187] sm:$0xff] %v189
  %s191 = scalar_lea.vmem %s2, 376
  %s192 = scalar_lea.vmem %s0, 376
  %v193 = vld [vmem:[%s192] sm:$0xff]
  %194 = vst [vmem:[%s191] sm:$0xff] %v193
  %s195 = scalar_lea.vmem %s2, 384
  %s196 = scalar_lea.vmem %s0, 384
  %v197 = vld [vmem:[%s196] sm:$0xff]
  %198 = vst [vmem:[%s195] sm:$0xff] %v197
  %s199 = scalar_lea.vmem %s2, 392
  %s200 = scalar_lea.vmem %s0, 392
  %v201 = vld [vmem:[%s200] sm:$0xff]
  %202 = vst [vmem:[%s199] sm:$0xff] %v201
  %s203 = scalar_lea.vmem %s2, 400
  %s204 = scalar_lea.vmem %s0, 400
  %v205 = vld [vmem:[%s204] sm:$0xff]
  %206 = vst [vmem:[%s203] sm:$0xff] %v205
  %s207 = scalar_lea.vmem %s2, 408
  %s208 = scalar_lea.vmem %s0, 408
  %v209 = vld [vmem:[%s208] sm:$0xff]
  %210 = vst [vmem:[%s207] sm:$0xff] %v209
  %s211 = scalar_lea.vmem %s2, 416
  %s212 = scalar_lea.vmem %s0, 416
  %v213 = vld [vmem:[%s212] sm:$0xff]
  %214 = vst [vmem:[%s211] sm:$0xff] %v213
  %s215 = scalar_lea.vmem %s2, 424
  %s216 = scalar_lea.vmem %s0, 424
  %v217 = vld [vmem:[%s216] sm:$0xff]
  %218 = vst [vmem:[%s215] sm:$0xff] %v217
  %s219 = scalar_lea.vmem %s2, 432
  %s220 = scalar_lea.vmem %s0, 432
  %v221 = vld [vmem:[%s220] sm:$0xff]
  %222 = vst [vmem:[%s219] sm:$0xff] %v221
  %s223 = scalar_lea.vmem %s2, 440
  %s224 = scalar_lea.vmem %s0, 440
  %v225 = vld [vmem:[%s224] sm:$0xff]
  %226 = vst [vmem:[%s223] sm:$0xff] %v225
  %s227 = scalar_lea.vmem %s2, 448
  %s228 = scalar_lea.vmem %s0, 448
  %v229 = vld [vmem:[%s228] sm:$0xff]
  %230 = vst [vmem:[%s227] sm:$0xff] %v229
  %s231 = scalar_lea.vmem %s2, 456
  %s232 = scalar_lea.vmem %s0, 456
  %v233 = vld [vmem:[%s232] sm:$0xff]
  %234 = vst [vmem:[%s231] sm:$0xff] %v233
  %s235 = scalar_lea.vmem %s2, 464
  %s236 = scalar_lea.vmem %s0, 464
  %v237 = vld [vmem:[%s236] sm:$0xff]
  %238 = vst [vmem:[%s235] sm:$0xff] %v237
  %s239 = scalar_lea.vmem %s2, 472
  %s240 = scalar_lea.vmem %s0, 472
  %v241 = vld [vmem:[%s240] sm:$0xff]
  %242 = vst [vmem:[%s239] sm:$0xff] %v241
  %s243 = scalar_lea.vmem %s2, 480
  %s244 = scalar_lea.vmem %s0, 480
  %v245 = vld [vmem:[%s244] sm:$0xff]
  %246 = vst [vmem:[%s243] sm:$0xff] %v245
  %s247 = scalar_lea.vmem %s2, 488
  %s248 = scalar_lea.vmem %s0, 488
  %v249 = vld [vmem:[%s248] sm:$0xff]
  %250 = vst [vmem:[%s247] sm:$0xff] %v249
  %s251 = scalar_lea.vmem %s2, 496
  %s252 = scalar_lea.vmem %s0, 496
  %v253 = vld [vmem:[%s252] sm:$0xff]
  %254 = vst [vmem:[%s251] sm:$0xff] %v253
  %s255 = scalar_lea.vmem %s2, 504
  %s256 = scalar_lea.vmem %s0, 504
  %v257 = vld [vmem:[%s256] sm:$0xff]
  %258 = vst [vmem:[%s255] sm:$0xff] %v257
  %s259 = scalar_lea.vmem %s2, 512
  %s260 = scalar_lea.vmem %s0, 512
  %v261 = vld [vmem:[%s260] sm:$0xff]
  %262 = vst [vmem:[%s259] sm:$0xff] %v261
  %s263 = scalar_lea.vmem %s2, 520
  %s264 = scalar_lea.vmem %s0, 520
  %v265 = vld [vmem:[%s264] sm:$0xff]
  %266 = vst [vmem:[%s263] sm:$0xff] %v265
  %s267 = scalar_lea.vmem %s2, 528
  %s268 = scalar_lea.vmem %s0, 528
  %v269 = vld [vmem:[%s268] sm:$0xff]
  %270 = vst [vmem:[%s267] sm:$0xff] %v269
  %s271 = scalar_lea.vmem %s2, 536
  %s272 = scalar_lea.vmem %s0, 536
  %v273 = vld [vmem:[%s272] sm:$0xff]
  %274 = vst [vmem:[%s271] sm:$0xff] %v273
  %s275 = scalar_lea.vmem %s2, 544
  %s276 = scalar_lea.vmem %s0, 544
  %v277 = vld [vmem:[%s276] sm:$0xff]
  %278 = vst [vmem:[%s275] sm:$0xff] %v277
  %s279 = scalar_lea.vmem %s2, 552
  %s280 = scalar_lea.vmem %s0, 552
  %v281 = vld [vmem:[%s280] sm:$0xff]
  %282 = vst [vmem:[%s279] sm:$0xff] %v281
  %s283 = scalar_lea.vmem %s2, 560
  %s284 = scalar_lea.vmem %s0, 560
  %v285 = vld [vmem:[%s284] sm:$0xff]
  %286 = vst [vmem:[%s283] sm:$0xff] %v285
  %s287 = scalar_lea.vmem %s2, 568
  %s288 = scalar_lea.vmem %s0, 568
  %v289 = vld [vmem:[%s288] sm:$0xff]
  %290 = vst [vmem:[%s287] sm:$0xff] %v289
  %s291 = scalar_lea.vmem %s2, 576
  %s292 = scalar_lea.vmem %s0, 576
  %v293 = vld [vmem:[%s292] sm:$0xff]
  %294 = vst [vmem:[%s291] sm:$0xff] %v293
  %s295 = scalar_lea.vmem %s2, 584
  %s296 = scalar_lea.vmem %s0, 584
  %v297 = vld [vmem:[%s296] sm:$0xff]
  %298 = vst [vmem:[%s295] sm:$0xff] %v297
  %s299 = scalar_lea.vmem %s2, 592
  %s300 = scalar_lea.vmem %s0, 592
  %v301 = vld [vmem:[%s300] sm:$0xff]
  %302 = vst [vmem:[%s299] sm:$0xff] %v301
  %s303 = scalar_lea.vmem %s2, 600
  %s304 = scalar_lea.vmem %s0, 600
  %v305 = vld [vmem:[%s304] sm:$0xff]
  %306 = vst [vmem:[%s303] sm:$0xff] %v305
  %s307 = scalar_lea.vmem %s2, 608
  %s308 = scalar_lea.vmem %s0, 608
  %v309 = vld [vmem:[%s308] sm:$0xff]
  %310 = vst [vmem:[%s307] sm:$0xff] %v309
  %s311 = scalar_lea.vmem %s2, 616
  %s312 = scalar_lea.vmem %s0, 616
  %v313 = vld [vmem:[%s312] sm:$0xff]
  %314 = vst [vmem:[%s311] sm:$0xff] %v313
  %s315 = scalar_lea.vmem %s2, 624
  %s316 = scalar_lea.vmem %s0, 624
  %v317 = vld [vmem:[%s316] sm:$0xff]
  %318 = vst [vmem:[%s315] sm:$0xff] %v317
  %s319 = scalar_lea.vmem %s2, 632
  %s320 = scalar_lea.vmem %s0, 632
  %v321 = vld [vmem:[%s320] sm:$0xff]
  %322 = vst [vmem:[%s319] sm:$0xff] %v321
  %s323 = scalar_lea.vmem %s2, 640
  %s324 = scalar_lea.vmem %s0, 640
  %v325 = vld [vmem:[%s324] sm:$0xff]
  %326 = vst [vmem:[%s323] sm:$0xff] %v325
  %s327 = scalar_lea.vmem %s2, 648
  %s328 = scalar_lea.vmem %s0, 648
  %v329 = vld [vmem:[%s328] sm:$0xff]
  %330 = vst [vmem:[%s327] sm:$0xff] %v329
  %s331 = scalar_lea.vmem %s2, 656
  %s332 = scalar_lea.vmem %s0, 656
  %v333 = vld [vmem:[%s332] sm:$0xff]
  %334 = vst [vmem:[%s331] sm:$0xff] %v333
  %s335 = scalar_lea.vmem %s2, 664
  %s336 = scalar_lea.vmem %s0, 664
  %v337 = vld [vmem:[%s336] sm:$0xff]
  %338 = vst [vmem:[%s335] sm:$0xff] %v337
  %s339 = scalar_lea.vmem %s2, 672
  %s340 = scalar_lea.vmem %s0, 672
  %v341 = vld [vmem:[%s340] sm:$0xff]
  %342 = vst [vmem:[%s339] sm:$0xff] %v341
  %s343 = scalar_lea.vmem %s2, 680
  %s344 = scalar_lea.vmem %s0, 680
  %v345 = vld [vmem:[%s344] sm:$0xff]
  %346 = vst [vmem:[%s343] sm:$0xff] %v345
  %s347 = scalar_lea.vmem %s2, 688
  %s348 = scalar_lea.vmem %s0, 688
  %v349 = vld [vmem:[%s348] sm:$0xff]
  %350 = vst [vmem:[%s347] sm:$0xff] %v349
  %s351 = scalar_lea.vmem %s2, 696
  %s352 = scalar_lea.vmem %s0, 696
  %v353 = vld [vmem:[%s352] sm:$0xff]
  %354 = vst [vmem:[%s351] sm:$0xff] %v353
  %s355 = scalar_lea.vmem %s2, 704
  %s356 = scalar_lea.vmem %s0, 704
  %v357 = vld [vmem:[%s356] sm:$0xff]
  %358 = vst [vmem:[%s355] sm:$0xff] %v357
  %s359 = scalar_lea.vmem %s2, 712
  %s360 = scalar_lea.vmem %s0, 712
  %v361 = vld [vmem:[%s360] sm:$0xff]
  %362 = vst [vmem:[%s359] sm:$0xff] %v361
  %s363 = scalar_lea.vmem %s2, 720
  %s364 = scalar_lea.vmem %s0, 720
  %v365 = vld [vmem:[%s364] sm:$0xff]
  %366 = vst [vmem:[%s363] sm:$0xff] %v365
  %s367 = scalar_lea.vmem %s2, 728
  %s368 = scalar_lea.vmem %s0, 728
  %v369 = vld [vmem:[%s368] sm:$0xff]
  %370 = vst [vmem:[%s367] sm:$0xff] %v369
  %s371 = scalar_lea.vmem %s2, 736
  %s372 = scalar_lea.vmem %s0, 736
  %v373 = vld [vmem:[%s372] sm:$0xff]
  %374 = vst [vmem:[%s371] sm:$0xff] %v373
  %s375 = scalar_lea.vmem %s2, 744
  %s376 = scalar_lea.vmem %s0, 744
  %v377 = vld [vmem:[%s376] sm:$0xff]
  %378 = vst [vmem:[%s375] sm:$0xff] %v377
  %s379 = scalar_lea.vmem %s2, 752
  %s380 = scalar_lea.vmem %s0, 752
  %v381 = vld [vmem:[%s380] sm:$0xff]
  %382 = vst [vmem:[%s379] sm:$0xff] %v381
  %s383 = scalar_lea.vmem %s2, 760
  %s384 = scalar_lea.vmem %s0, 760
  %v385 = vld [vmem:[%s384] sm:$0xff]
  %386 = vst [vmem:[%s383] sm:$0xff] %v385
  %s387 = scalar_lea.vmem %s2, 768
  %s388 = scalar_lea.vmem %s0, 768
  %v389 = vld [vmem:[%s388] sm:$0xff]
  %390 = vst [vmem:[%s387] sm:$0xff] %v389
  %s391 = scalar_lea.vmem %s2, 776
  %s392 = scalar_lea.vmem %s0, 776
  %v393 = vld [vmem:[%s392] sm:$0xff]
  %394 = vst [vmem:[%s391] sm:$0xff] %v393
  %s395 = scalar_lea.vmem %s2, 784
  %s396 = scalar_lea.vmem %s0, 784
  %v397 = vld [vmem:[%s396] sm:$0xff]
  %398 = vst [vmem:[%s395] sm:$0xff] %v397
  %s399 = scalar_lea.vmem %s2, 792
  %s400 = scalar_lea.vmem %s0, 792
  %v401 = vld [vmem:[%s400] sm:$0xff]
  %402 = vst [vmem:[%s399] sm:$0xff] %v401
  %s403 = scalar_lea.vmem %s2, 800
  %s404 = scalar_lea.vmem %s0, 800
  %v405 = vld [vmem:[%s404] sm:$0xff]
  %406 = vst [vmem:[%s403] sm:$0xff] %v405
  %s407 = scalar_lea.vmem %s2, 808
  %s408 = scalar_lea.vmem %s0, 808
  %v409 = vld [vmem:[%s408] sm:$0xff]
  %410 = vst [vmem:[%s407] sm:$0xff] %v409
  %s411 = scalar_lea.vmem %s2, 816
  %s412 = scalar_lea.vmem %s0, 816
  %v413 = vld [vmem:[%s412] sm:$0xff]
  %414 = vst [vmem:[%s411] sm:$0xff] %v413
  %s415 = scalar_lea.vmem %s2, 824
  %s416 = scalar_lea.vmem %s0, 824
  %v417 = vld [vmem:[%s416] sm:$0xff]
  %418 = vst [vmem:[%s415] sm:$0xff] %v417
  %s419 = scalar_lea.vmem %s2, 832
  %s420 = scalar_lea.vmem %s0, 832
  %v421 = vld [vmem:[%s420] sm:$0xff]
  %422 = vst [vmem:[%s419] sm:$0xff] %v421
  %s423 = scalar_lea.vmem %s2, 840
  %s424 = scalar_lea.vmem %s0, 840
  %v425 = vld [vmem:[%s424] sm:$0xff]
  %426 = vst [vmem:[%s423] sm:$0xff] %v425
  %s427 = scalar_lea.vmem %s2, 848
  %s428 = scalar_lea.vmem %s0, 848
  %v429 = vld [vmem:[%s428] sm:$0xff]
  %430 = vst [vmem:[%s427] sm:$0xff] %v429
  %s431 = scalar_lea.vmem %s2, 856
  %s432 = scalar_lea.vmem %s0, 856
  %v433 = vld [vmem:[%s432] sm:$0xff]
  %434 = vst [vmem:[%s431] sm:$0xff] %v433
  %s435 = scalar_lea.vmem %s2, 864
  %s436 = scalar_lea.vmem %s0, 864
  %v437 = vld [vmem:[%s436] sm:$0xff]
  %438 = vst [vmem:[%s435] sm:$0xff] %v437
  %s439 = scalar_lea.vmem %s2, 872
  %s440 = scalar_lea.vmem %s0, 872
  %v441 = vld [vmem:[%s440] sm:$0xff]
  %442 = vst [vmem:[%s439] sm:$0xff] %v441
  %s443 = scalar_lea.vmem %s2, 880
  %s444 = scalar_lea.vmem %s0, 880
  %v445 = vld [vmem:[%s444] sm:$0xff]
  %446 = vst [vmem:[%s443] sm:$0xff] %v445
  %s447 = scalar_lea.vmem %s2, 888
  %s448 = scalar_lea.vmem %s0, 888
  %v449 = vld [vmem:[%s448] sm:$0xff]
  %450 = vst [vmem:[%s447] sm:$0xff] %v449
  %s451 = scalar_lea.vmem %s2, 896
  %s452 = scalar_lea.vmem %s0, 896
  %v453 = vld [vmem:[%s452] sm:$0xff]
  %454 = vst [vmem:[%s451] sm:$0xff] %v453
  %s455 = scalar_lea.vmem %s2, 904
  %s456 = scalar_lea.vmem %s0, 904
  %v457 = vld [vmem:[%s456] sm:$0xff]
  %458 = vst [vmem:[%s455] sm:$0xff] %v457
  %s459 = scalar_lea.vmem %s2, 912
  %s460 = scalar_lea.vmem %s0, 912
  %v461 = vld [vmem:[%s460] sm:$0xff]
  %462 = vst [vmem:[%s459] sm:$0xff] %v461
  %s463 = scalar_lea.vmem %s2, 920
  %s464 = scalar_lea.vmem %s0, 920
  %v465 = vld [vmem:[%s464] sm:$0xff]
  %466 = vst [vmem:[%s463] sm:$0xff] %v465
  %s467 = scalar_lea.vmem %s2, 928
  %s468 = scalar_lea.vmem %s0, 928
  %v469 = vld [vmem:[%s468] sm:$0xff]
  %470 = vst [vmem:[%s467] sm:$0xff] %v469
  %s471 = scalar_lea.vmem %s2, 936
  %s472 = scalar_lea.vmem %s0, 936
  %v473 = vld [vmem:[%s472] sm:$0xff]
  %474 = vst [vmem:[%s471] sm:$0xff] %v473
  %s475 = scalar_lea.vmem %s2, 944
  %s476 = scalar_lea.vmem %s0, 944
  %v477 = vld [vmem:[%s476] sm:$0xff]
  %478 = vst [vmem:[%s475] sm:$0xff] %v477
  %s479 = scalar_lea.vmem %s2, 952
  %s480 = scalar_lea.vmem %s0, 952
  %v481 = vld [vmem:[%s480] sm:$0xff]
  %482 = vst [vmem:[%s479] sm:$0xff] %v481
  %s483 = scalar_lea.vmem %s2, 960
  %s484 = scalar_lea.vmem %s0, 960
  %v485 = vld [vmem:[%s484] sm:$0xff]
  %486 = vst [vmem:[%s483] sm:$0xff] %v485
  %s487 = scalar_lea.vmem %s2, 968
  %s488 = scalar_lea.vmem %s0, 968
  %v489 = vld [vmem:[%s488] sm:$0xff]
  %490 = vst [vmem:[%s487] sm:$0xff] %v489
  %s491 = scalar_lea.vmem %s2, 976
  %s492 = scalar_lea.vmem %s0, 976
  %v493 = vld [vmem:[%s492] sm:$0xff]
  %494 = vst [vmem:[%s491] sm:$0xff] %v493
  %s495 = scalar_lea.vmem %s2, 984
  %s496 = scalar_lea.vmem %s0, 984
  %v497 = vld [vmem:[%s496] sm:$0xff]
  %498 = vst [vmem:[%s495] sm:$0xff] %v497
  %s499 = scalar_lea.vmem %s2, 992
  %s500 = scalar_lea.vmem %s0, 992
  %v501 = vld [vmem:[%s500] sm:$0xff]
  %502 = vst [vmem:[%s499] sm:$0xff] %v501
  %v503 = vld [vmem:[%s1] sm:$0xff]
  %504 = vst [vmem:[%s4] sm:$0xff] %v503
  %s505 = scalar_lea.vmem %s4, 8
  %s506 = scalar_lea.vmem %s1, 8
  %v507 = vld [vmem:[%s506] sm:$0xff]
  %508 = vst [vmem:[%s505] sm:$0xff] %v507
  %s509 = scalar_lea.vmem %s4, 16
  %s510 = scalar_lea.vmem %s1, 16
  %v511 = vld [vmem:[%s510] sm:$0xff]
  %512 = vst [vmem:[%s509] sm:$0xff] %v511
  %s513 = scalar_lea.vmem %s4, 24
  %s514 = scalar_lea.vmem %s1, 24
  %v515 = vld [vmem:[%s514] sm:$0xff]
  %516 = vst [vmem:[%s513] sm:$0xff] %v515
  %s517 = scalar_lea.vmem %s4, 32
  %s518 = scalar_lea.vmem %s1, 32
  %v519 = vld [vmem:[%s518] sm:$0xff]
  %520 = vst [vmem:[%s517] sm:$0xff] %v519
  %s521 = scalar_lea.vmem %s4, 40
  %s522 = scalar_lea.vmem %s1, 40
  %v523 = vld [vmem:[%s522] sm:$0xff]
  %524 = vst [vmem:[%s521] sm:$0xff] %v523
  %s525 = scalar_lea.vmem %s4, 48
  %s526 = scalar_lea.vmem %s1, 48
  %v527 = vld [vmem:[%s526] sm:$0xff]
  %528 = vst [vmem:[%s525] sm:$0xff] %v527
  %s529 = scalar_lea.vmem %s4, 56
  %s530 = scalar_lea.vmem %s1, 56
  %v531 = vld [vmem:[%s530] sm:$0xff]
  %532 = vst [vmem:[%s529] sm:$0xff] %v531
  %s533 = scalar_lea.vmem %s4, 64
  %s534 = scalar_lea.vmem %s1, 64
  %v535 = vld [vmem:[%s534] sm:$0xff]
  %536 = vst [vmem:[%s533] sm:$0xff] %v535
  %s537 = scalar_lea.vmem %s4, 72
  %s538 = scalar_lea.vmem %s1, 72
  %v539 = vld [vmem:[%s538] sm:$0xff]
  %540 = vst [vmem:[%s537] sm:$0xff] %v539
  %s541 = scalar_lea.vmem %s4, 80
  %s542 = scalar_lea.vmem %s1, 80
  %v543 = vld [vmem:[%s542] sm:$0xff]
  %544 = vst [vmem:[%s541] sm:$0xff] %v543
  %s545 = scalar_lea.vmem %s4, 88
  %s546 = scalar_lea.vmem %s1, 88
  %v547 = vld [vmem:[%s546] sm:$0xff]
  %548 = vst [vmem:[%s545] sm:$0xff] %v547
  %s549 = scalar_lea.vmem %s4, 96
  %s550 = scalar_lea.vmem %s1, 96
  %v551 = vld [vmem:[%s550] sm:$0xff]
  %552 = vst [vmem:[%s549] sm:$0xff] %v551
  %s553 = scalar_lea.vmem %s4, 104
  %s554 = scalar_lea.vmem %s1, 104
  %v555 = vld [vmem:[%s554] sm:$0xff]
  %556 = vst [vmem:[%s553] sm:$0xff] %v555
  %s557 = scalar_lea.vmem %s4, 112
  %s558 = scalar_lea.vmem %s1, 112
  %v559 = vld [vmem:[%s558] sm:$0xff]
  %560 = vst [vmem:[%s557] sm:$0xff] %v559
  %s561 = scalar_lea.vmem %s4, 120
  %s562 = scalar_lea.vmem %s1, 120
  %v563 = vld [vmem:[%s562] sm:$0xff]
  %564 = vst [vmem:[%s561] sm:$0xff] %v563
  %s565 = scalar_lea.vmem %s4, 128
  %s566 = scalar_lea.vmem %s1, 128
  %v567 = vld [vmem:[%s566] sm:$0xff]
  %568 = vst [vmem:[%s565] sm:$0xff] %v567
  %s569 = scalar_lea.vmem %s4, 136
  %s570 = scalar_lea.vmem %s1, 136
  %v571 = vld [vmem:[%s570] sm:$0xff]
  %572 = vst [vmem:[%s569] sm:$0xff] %v571
  %s573 = scalar_lea.vmem %s4, 144
  %s574 = scalar_lea.vmem %s1, 144
  %v575 = vld [vmem:[%s574] sm:$0xff]
  %576 = vst [vmem:[%s573] sm:$0xff] %v575
  %s577 = scalar_lea.vmem %s4, 152
  %s578 = scalar_lea.vmem %s1, 152
  %v579 = vld [vmem:[%s578] sm:$0xff]
  %580 = vst [vmem:[%s577] sm:$0xff] %v579
  %s581 = scalar_lea.vmem %s4, 160
  %s582 = scalar_lea.vmem %s1, 160
  %v583 = vld [vmem:[%s582] sm:$0xff]
  %584 = vst [vmem:[%s581] sm:$0xff] %v583
  %s585 = scalar_lea.vmem %s4, 168
  %s586 = scalar_lea.vmem %s1, 168
  %v587 = vld [vmem:[%s586] sm:$0xff]
  %588 = vst [vmem:[%s585] sm:$0xff] %v587
  %s589 = scalar_lea.vmem %s4, 176
  %s590 = scalar_lea.vmem %s1, 176
  %v591 = vld [vmem:[%s590] sm:$0xff]
  %592 = vst [vmem:[%s589] sm:$0xff] %v591
  %s593 = scalar_lea.vmem %s4, 184
  %s594 = scalar_lea.vmem %s1, 184
  %v595 = vld [vmem:[%s594] sm:$0xff]
  %596 = vst [vmem:[%s593] sm:$0xff] %v595
  %s597 = scalar_lea.vmem %s4, 192
  %s598 = scalar_lea.vmem %s1, 192
  %v599 = vld [vmem:[%s598] sm:$0xff]
  %600 = vst [vmem:[%s597] sm:$0xff] %v599
  %s601 = scalar_lea.vmem %s4, 200
  %s602 = scalar_lea.vmem %s1, 200
  %v603 = vld [vmem:[%s602] sm:$0xff]
  %604 = vst [vmem:[%s601] sm:$0xff] %v603
  %s605 = scalar_lea.vmem %s4, 208
  %s606 = scalar_lea.vmem %s1, 208
  %v607 = vld [vmem:[%s606] sm:$0xff]
  %608 = vst [vmem:[%s605] sm:$0xff] %v607
  %s609 = scalar_lea.vmem %s4, 216
  %s610 = scalar_lea.vmem %s1, 216
  %v611 = vld [vmem:[%s610] sm:$0xff]
  %612 = vst [vmem:[%s609] sm:$0xff] %v611
  %s613 = scalar_lea.vmem %s4, 224
  %s614 = scalar_lea.vmem %s1, 224
  %v615 = vld [vmem:[%s614] sm:$0xff]
  %616 = vst [vmem:[%s613] sm:$0xff] %v615
  %s617 = scalar_lea.vmem %s4, 232
  %s618 = scalar_lea.vmem %s1, 232
  %v619 = vld [vmem:[%s618] sm:$0xff]
  %620 = vst [vmem:[%s617] sm:$0xff] %v619
  %s621 = scalar_lea.vmem %s4, 240
  %s622 = scalar_lea.vmem %s1, 240
  %v623 = vld [vmem:[%s622] sm:$0xff]
  %624 = vst [vmem:[%s621] sm:$0xff] %v623
  %s625 = scalar_lea.vmem %s4, 248
  %s626 = scalar_lea.vmem %s1, 248
  %v627 = vld [vmem:[%s626] sm:$0xff]
  %628 = vst [vmem:[%s625] sm:$0xff] %v627
  %s629 = scalar_lea.vmem %s4, 256
  %s630 = scalar_lea.vmem %s1, 256
  %v631 = vld [vmem:[%s630] sm:$0xff]
  %632 = vst [vmem:[%s629] sm:$0xff] %v631
  %s633 = scalar_lea.vmem %s4, 264
  %s634 = scalar_lea.vmem %s1, 264
  %v635 = vld [vmem:[%s634] sm:$0xff]
  %636 = vst [vmem:[%s633] sm:$0xff] %v635
  %s637 = scalar_lea.vmem %s4, 272
  %s638 = scalar_lea.vmem %s1, 272
  %v639 = vld [vmem:[%s638] sm:$0xff]
  %640 = vst [vmem:[%s637] sm:$0xff] %v639
  %s641 = scalar_lea.vmem %s4, 280
  %s642 = scalar_lea.vmem %s1, 280
  %v643 = vld [vmem:[%s642] sm:$0xff]
  %644 = vst [vmem:[%s641] sm:$0xff] %v643
  %s645 = scalar_lea.vmem %s4, 288
  %s646 = scalar_lea.vmem %s1, 288
  %v647 = vld [vmem:[%s646] sm:$0xff]
  %648 = vst [vmem:[%s645] sm:$0xff] %v647
  %s649 = scalar_lea.vmem %s4, 296
  %s650 = scalar_lea.vmem %s1, 296
  %v651 = vld [vmem:[%s650] sm:$0xff]
  %652 = vst [vmem:[%s649] sm:$0xff] %v651
  %s653 = scalar_lea.vmem %s4, 304
  %s654 = scalar_lea.vmem %s1, 304
  %v655 = vld [vmem:[%s654] sm:$0xff]
  %656 = vst [vmem:[%s653] sm:$0xff] %v655
  %s657 = scalar_lea.vmem %s4, 312
  %s658 = scalar_lea.vmem %s1, 312
  %v659 = vld [vmem:[%s658] sm:$0xff]
  %660 = vst [vmem:[%s657] sm:$0xff] %v659
  %s661 = scalar_lea.vmem %s4, 320
  %s662 = scalar_lea.vmem %s1, 320
  %v663 = vld [vmem:[%s662] sm:$0xff]
  %664 = vst [vmem:[%s661] sm:$0xff] %v663
  %s665 = scalar_lea.vmem %s4, 328
  %s666 = scalar_lea.vmem %s1, 328
  %v667 = vld [vmem:[%s666] sm:$0xff]
  %668 = vst [vmem:[%s665] sm:$0xff] %v667
  %s669 = scalar_lea.vmem %s4, 336
  %s670 = scalar_lea.vmem %s1, 336
  %v671 = vld [vmem:[%s670] sm:$0xff]
  %672 = vst [vmem:[%s669] sm:$0xff] %v671
  %s673 = scalar_lea.vmem %s4, 344
  %s674 = scalar_lea.vmem %s1, 344
  %v675 = vld [vmem:[%s674] sm:$0xff]
  %676 = vst [vmem:[%s673] sm:$0xff] %v675
  %s677 = scalar_lea.vmem %s4, 352
  %s678 = scalar_lea.vmem %s1, 352
  %v679 = vld [vmem:[%s678] sm:$0xff]
  %680 = vst [vmem:[%s677] sm:$0xff] %v679
  %s681 = scalar_lea.vmem %s4, 360
  %s682 = scalar_lea.vmem %s1, 360
  %v683 = vld [vmem:[%s682] sm:$0xff]
  %684 = vst [vmem:[%s681] sm:$0xff] %v683
  %s685 = scalar_lea.vmem %s4, 368
  %s686 = scalar_lea.vmem %s1, 368
  %v687 = vld [vmem:[%s686] sm:$0xff]
  %688 = vst [vmem:[%s685] sm:$0xff] %v687
  %s689 = scalar_lea.vmem %s4, 376
  %s690 = scalar_lea.vmem %s1, 376
  %v691 = vld [vmem:[%s690] sm:$0xff]
  %692 = vst [vmem:[%s689] sm:$0xff] %v691
  %s693 = scalar_lea.vmem %s4, 384
  %s694 = scalar_lea.vmem %s1, 384
  %v695 = vld [vmem:[%s694] sm:$0xff]
  %696 = vst [vmem:[%s693] sm:$0xff] %v695
  %s697 = scalar_lea.vmem %s4, 392
  %s698 = scalar_lea.vmem %s1, 392
  %v699 = vld [vmem:[%s698] sm:$0xff]
  %700 = vst [vmem:[%s697] sm:$0xff] %v699
  %s701 = scalar_lea.vmem %s4, 400
  %s702 = scalar_lea.vmem %s1, 400
  %v703 = vld [vmem:[%s702] sm:$0xff]
  %704 = vst [vmem:[%s701] sm:$0xff] %v703
  %s705 = scalar_lea.vmem %s4, 408
  %s706 = scalar_lea.vmem %s1, 408
  %v707 = vld [vmem:[%s706] sm:$0xff]
  %708 = vst [vmem:[%s705] sm:$0xff] %v707
  %s709 = scalar_lea.vmem %s4, 416
  %s710 = scalar_lea.vmem %s1, 416
  %v711 = vld [vmem:[%s710] sm:$0xff]
  %712 = vst [vmem:[%s709] sm:$0xff] %v711
  %s713 = scalar_lea.vmem %s4, 424
  %s714 = scalar_lea.vmem %s1, 424
  %v715 = vld [vmem:[%s714] sm:$0xff]
  %716 = vst [vmem:[%s713] sm:$0xff] %v715
  %s717 = scalar_lea.vmem %s4, 432
  %s718 = scalar_lea.vmem %s1, 432
  %v719 = vld [vmem:[%s718] sm:$0xff]
  %720 = vst [vmem:[%s717] sm:$0xff] %v719
  %s721 = scalar_lea.vmem %s4, 440
  %s722 = scalar_lea.vmem %s1, 440
  %v723 = vld [vmem:[%s722] sm:$0xff]
  %724 = vst [vmem:[%s721] sm:$0xff] %v723
  %s725 = scalar_lea.vmem %s4, 448
  %s726 = scalar_lea.vmem %s1, 448
  %v727 = vld [vmem:[%s726] sm:$0xff]
  %728 = vst [vmem:[%s725] sm:$0xff] %v727
  %s729 = scalar_lea.vmem %s4, 456
  %s730 = scalar_lea.vmem %s1, 456
  %v731 = vld [vmem:[%s730] sm:$0xff]
  %732 = vst [vmem:[%s729] sm:$0xff] %v731
  %s733 = scalar_lea.vmem %s4, 464
  %s734 = scalar_lea.vmem %s1, 464
  %v735 = vld [vmem:[%s734] sm:$0xff]
  %736 = vst [vmem:[%s733] sm:$0xff] %v735
  %s737 = scalar_lea.vmem %s4, 472
  %s738 = scalar_lea.vmem %s1, 472
  %v739 = vld [vmem:[%s738] sm:$0xff]
  %740 = vst [vmem:[%s737] sm:$0xff] %v739
  %s741 = scalar_lea.vmem %s4, 480
  %s742 = scalar_lea.vmem %s1, 480
  %v743 = vld [vmem:[%s742] sm:$0xff]
  %744 = vst [vmem:[%s741] sm:$0xff] %v743
  %s745 = scalar_lea.vmem %s4, 488
  %s746 = scalar_lea.vmem %s1, 488
  %v747 = vld [vmem:[%s746] sm:$0xff]
  %748 = vst [vmem:[%s745] sm:$0xff] %v747
  %s749 = scalar_lea.vmem %s4, 496
  %s750 = scalar_lea.vmem %s1, 496
  %v751 = vld [vmem:[%s750] sm:$0xff]
  %752 = vst [vmem:[%s749] sm:$0xff] %v751
  %s753 = scalar_lea.vmem %s4, 504
  %s754 = scalar_lea.vmem %s1, 504
  %v755 = vld [vmem:[%s754] sm:$0xff]
  %756 = vst [vmem:[%s753] sm:$0xff] %v755
  %s757 = scalar_lea.vmem %s4, 512
  %s758 = scalar_lea.vmem %s1, 512
  %v759 = vld [vmem:[%s758] sm:$0xff]
  %760 = vst [vmem:[%s757] sm:$0xff] %v759
  %s761 = scalar_lea.vmem %s4, 520
  %s762 = scalar_lea.vmem %s1, 520
  %v763 = vld [vmem:[%s762] sm:$0xff]
  %764 = vst [vmem:[%s761] sm:$0xff] %v763
  %s765 = scalar_lea.vmem %s4, 528
  %s766 = scalar_lea.vmem %s1, 528
  %v767 = vld [vmem:[%s766] sm:$0xff]
  %768 = vst [vmem:[%s765] sm:$0xff] %v767
  %s769 = scalar_lea.vmem %s4, 536
  %s770 = scalar_lea.vmem %s1, 536
  %v771 = vld [vmem:[%s770] sm:$0xff]
  %772 = vst [vmem:[%s769] sm:$0xff] %v771
  %s773 = scalar_lea.vmem %s4, 544
  %s774 = scalar_lea.vmem %s1, 544
  %v775 = vld [vmem:[%s774] sm:$0xff]
  %776 = vst [vmem:[%s773] sm:$0xff] %v775
  %s777 = scalar_lea.vmem %s4, 552
  %s778 = scalar_lea.vmem %s1, 552
  %v779 = vld [vmem:[%s778] sm:$0xff]
  %780 = vst [vmem:[%s777] sm:$0xff] %v779
  %s781 = scalar_lea.vmem %s4, 560
  %s782 = scalar_lea.vmem %s1, 560
  %v783 = vld [vmem:[%s782] sm:$0xff]
  %784 = vst [vmem:[%s781] sm:$0xff] %v783
  %s785 = scalar_lea.vmem %s4, 568
  %s786 = scalar_lea.vmem %s1, 568
  %v787 = vld [vmem:[%s786] sm:$0xff]
  %788 = vst [vmem:[%s785] sm:$0xff] %v787
  %s789 = scalar_lea.vmem %s4, 576
  %s790 = scalar_lea.vmem %s1, 576
  %v791 = vld [vmem:[%s790] sm:$0xff]
  %792 = vst [vmem:[%s789] sm:$0xff] %v791
  %s793 = scalar_lea.vmem %s4, 584
  %s794 = scalar_lea.vmem %s1, 584
  %v795 = vld [vmem:[%s794] sm:$0xff]
  %796 = vst [vmem:[%s793] sm:$0xff] %v795
  %s797 = scalar_lea.vmem %s4, 592
  %s798 = scalar_lea.vmem %s1, 592
  %v799 = vld [vmem:[%s798] sm:$0xff]
  %800 = vst [vmem:[%s797] sm:$0xff] %v799
  %s801 = scalar_lea.vmem %s4, 600
  %s802 = scalar_lea.vmem %s1, 600
  %v803 = vld [vmem:[%s802] sm:$0xff]
  %804 = vst [vmem:[%s801] sm:$0xff] %v803
  %s805 = scalar_lea.vmem %s4, 608
  %s806 = scalar_lea.vmem %s1, 608
  %v807 = vld [vmem:[%s806] sm:$0xff]
  %808 = vst [vmem:[%s805] sm:$0xff] %v807
  %s809 = scalar_lea.vmem %s4, 616
  %s810 = scalar_lea.vmem %s1, 616
  %v811 = vld [vmem:[%s810] sm:$0xff]
  %812 = vst [vmem:[%s809] sm:$0xff] %v811
  %s813 = scalar_lea.vmem %s4, 624
  %s814 = scalar_lea.vmem %s1, 624
  %v815 = vld [vmem:[%s814] sm:$0xff]
  %816 = vst [vmem:[%s813] sm:$0xff] %v815
  %s817 = scalar_lea.vmem %s4, 632
  %s818 = scalar_lea.vmem %s1, 632
  %v819 = vld [vmem:[%s818] sm:$0xff]
  %820 = vst [vmem:[%s817] sm:$0xff] %v819
  %s821 = scalar_lea.vmem %s4, 640
  %s822 = scalar_lea.vmem %s1, 640
  %v823 = vld [vmem:[%s822] sm:$0xff]
  %824 = vst [vmem:[%s821] sm:$0xff] %v823
  %s825 = scalar_lea.vmem %s4, 648
  %s826 = scalar_lea.vmem %s1, 648
  %v827 = vld [vmem:[%s826] sm:$0xff]
  %828 = vst [vmem:[%s825] sm:$0xff] %v827
  %s829 = scalar_lea.vmem %s4, 656
  %s830 = scalar_lea.vmem %s1, 656
  %v831 = vld [vmem:[%s830] sm:$0xff]
  %832 = vst [vmem:[%s829] sm:$0xff] %v831
  %s833 = scalar_lea.vmem %s4, 664
  %s834 = scalar_lea.vmem %s1, 664
  %v835 = vld [vmem:[%s834] sm:$0xff]
  %836 = vst [vmem:[%s833] sm:$0xff] %v835
  %s837 = scalar_lea.vmem %s4, 672
  %s838 = scalar_lea.vmem %s1, 672
  %v839 = vld [vmem:[%s838] sm:$0xff]
  %840 = vst [vmem:[%s837] sm:$0xff] %v839
  %s841 = scalar_lea.vmem %s4, 680
  %s842 = scalar_lea.vmem %s1, 680
  %v843 = vld [vmem:[%s842] sm:$0xff]
  %844 = vst [vmem:[%s841] sm:$0xff] %v843
  %s845 = scalar_lea.vmem %s4, 688
  %s846 = scalar_lea.vmem %s1, 688
  %v847 = vld [vmem:[%s846] sm:$0xff]
  %848 = vst [vmem:[%s845] sm:$0xff] %v847
  %s849 = scalar_lea.vmem %s4, 696
  %s850 = scalar_lea.vmem %s1, 696
  %v851 = vld [vmem:[%s850] sm:$0xff]
  %852 = vst [vmem:[%s849] sm:$0xff] %v851
  %s853 = scalar_lea.vmem %s4, 704
  %s854 = scalar_lea.vmem %s1, 704
  %v855 = vld [vmem:[%s854] sm:$0xff]
  %856 = vst [vmem:[%s853] sm:$0xff] %v855
  %s857 = scalar_lea.vmem %s4, 712
  %s858 = scalar_lea.vmem %s1, 712
  %v859 = vld [vmem:[%s858] sm:$0xff]
  %860 = vst [vmem:[%s857] sm:$0xff] %v859
  %s861 = scalar_lea.vmem %s4, 720
  %s862 = scalar_lea.vmem %s1, 720
  %v863 = vld [vmem:[%s862] sm:$0xff]
  %864 = vst [vmem:[%s861] sm:$0xff] %v863
  %s865 = scalar_lea.vmem %s4, 728
  %s866 = scalar_lea.vmem %s1, 728
  %v867 = vld [vmem:[%s866] sm:$0xff]
  %868 = vst [vmem:[%s865] sm:$0xff] %v867
  %s869 = scalar_lea.vmem %s4, 736
  %s870 = scalar_lea.vmem %s1, 736
  %v871 = vld [vmem:[%s870] sm:$0xff]
  %872 = vst [vmem:[%s869] sm:$0xff] %v871
  %s873 = scalar_lea.vmem %s4, 744
  %s874 = scalar_lea.vmem %s1, 744
  %v875 = vld [vmem:[%s874] sm:$0xff]
  %876 = vst [vmem:[%s873] sm:$0xff] %v875
  %s877 = scalar_lea.vmem %s4, 752
  %s878 = scalar_lea.vmem %s1, 752
  %v879 = vld [vmem:[%s878] sm:$0xff]
  %880 = vst [vmem:[%s877] sm:$0xff] %v879
  %s881 = scalar_lea.vmem %s4, 760
  %s882 = scalar_lea.vmem %s1, 760
  %v883 = vld [vmem:[%s882] sm:$0xff]
  %884 = vst [vmem:[%s881] sm:$0xff] %v883
  %s885 = scalar_lea.vmem %s4, 768
  %s886 = scalar_lea.vmem %s1, 768
  %v887 = vld [vmem:[%s886] sm:$0xff]
  %888 = vst [vmem:[%s885] sm:$0xff] %v887
  %s889 = scalar_lea.vmem %s4, 776
  %s890 = scalar_lea.vmem %s1, 776
  %v891 = vld [vmem:[%s890] sm:$0xff]
  %892 = vst [vmem:[%s889] sm:$0xff] %v891
  %s893 = scalar_lea.vmem %s4, 784
  %s894 = scalar_lea.vmem %s1, 784
  %v895 = vld [vmem:[%s894] sm:$0xff]
  %896 = vst [vmem:[%s893] sm:$0xff] %v895
  %s897 = scalar_lea.vmem %s4, 792
  %s898 = scalar_lea.vmem %s1, 792
  %v899 = vld [vmem:[%s898] sm:$0xff]
  %900 = vst [vmem:[%s897] sm:$0xff] %v899
  %s901 = scalar_lea.vmem %s4, 800
  %s902 = scalar_lea.vmem %s1, 800
  %v903 = vld [vmem:[%s902] sm:$0xff]
  %904 = vst [vmem:[%s901] sm:$0xff] %v903
  %s905 = scalar_lea.vmem %s4, 808
  %s906 = scalar_lea.vmem %s1, 808
  %v907 = vld [vmem:[%s906] sm:$0xff]
  %908 = vst [vmem:[%s905] sm:$0xff] %v907
  %s909 = scalar_lea.vmem %s4, 816
  %s910 = scalar_lea.vmem %s1, 816
  %v911 = vld [vmem:[%s910] sm:$0xff]
  %912 = vst [vmem:[%s909] sm:$0xff] %v911
  %s913 = scalar_lea.vmem %s4, 824
  %s914 = scalar_lea.vmem %s1, 824
  %v915 = vld [vmem:[%s914] sm:$0xff]
  %916 = vst [vmem:[%s913] sm:$0xff] %v915
  %s917 = scalar_lea.vmem %s4, 832
  %s918 = scalar_lea.vmem %s1, 832
  %v919 = vld [vmem:[%s918] sm:$0xff]
  %920 = vst [vmem:[%s917] sm:$0xff] %v919
  %s921 = scalar_lea.vmem %s4, 840
  %s922 = scalar_lea.vmem %s1, 840
  %v923 = vld [vmem:[%s922] sm:$0xff]
  %924 = vst [vmem:[%s921] sm:$0xff] %v923
  %s925 = scalar_lea.vmem %s4, 848
  %s926 = scalar_lea.vmem %s1, 848
  %v927 = vld [vmem:[%s926] sm:$0xff]
  %928 = vst [vmem:[%s925] sm:$0xff] %v927
  %s929 = scalar_lea.vmem %s4, 856
  %s930 = scalar_lea.vmem %s1, 856
  %v931 = vld [vmem:[%s930] sm:$0xff]
  %932 = vst [vmem:[%s929] sm:$0xff] %v931
  %s933 = scalar_lea.vmem %s4, 864
  %s934 = scalar_lea.vmem %s1, 864
  %v935 = vld [vmem:[%s934] sm:$0xff]
  %936 = vst [vmem:[%s933] sm:$0xff] %v935
  %s937 = scalar_lea.vmem %s4, 872
  %s938 = scalar_lea.vmem %s1, 872
  %v939 = vld [vmem:[%s938] sm:$0xff]
  %940 = vst [vmem:[%s937] sm:$0xff] %v939
  %s941 = scalar_lea.vmem %s4, 880
  %s942 = scalar_lea.vmem %s1, 880
  %v943 = vld [vmem:[%s942] sm:$0xff]
  %944 = vst [vmem:[%s941] sm:$0xff] %v943
  %s945 = scalar_lea.vmem %s4, 888
  %s946 = scalar_lea.vmem %s1, 888
  %v947 = vld [vmem:[%s946] sm:$0xff]
  %948 = vst [vmem:[%s945] sm:$0xff] %v947
  %s949 = scalar_lea.vmem %s4, 896
  %s950 = scalar_lea.vmem %s1, 896
  %v951 = vld [vmem:[%s950] sm:$0xff]
  %952 = vst [vmem:[%s949] sm:$0xff] %v951
  %s953 = scalar_lea.vmem %s4, 904
  %s954 = scalar_lea.vmem %s1, 904
  %v955 = vld [vmem:[%s954] sm:$0xff]
  %956 = vst [vmem:[%s953] sm:$0xff] %v955
  %s957 = scalar_lea.vmem %s4, 912
  %s958 = scalar_lea.vmem %s1, 912
  %v959 = vld [vmem:[%s958] sm:$0xff]
  %960 = vst [vmem:[%s957] sm:$0xff] %v959
  %s961 = scalar_lea.vmem %s4, 920
  %s962 = scalar_lea.vmem %s1, 920
  %v963 = vld [vmem:[%s962] sm:$0xff]
  %964 = vst [vmem:[%s961] sm:$0xff] %v963
  %s965 = scalar_lea.vmem %s4, 928
  %s966 = scalar_lea.vmem %s1, 928
  %v967 = vld [vmem:[%s966] sm:$0xff]
  %968 = vst [vmem:[%s965] sm:$0xff] %v967
  %s969 = scalar_lea.vmem %s4, 936
  %s970 = scalar_lea.vmem %s1, 936
  %v971 = vld [vmem:[%s970] sm:$0xff]
  %972 = vst [vmem:[%s969] sm:$0xff] %v971
  %s973 = scalar_lea.vmem %s4, 944
  %s974 = scalar_lea.vmem %s1, 944
  %v975 = vld [vmem:[%s974] sm:$0xff]
  %976 = vst [vmem:[%s973] sm:$0xff] %v975
  %s977 = scalar_lea.vmem %s4, 952
  %s978 = scalar_lea.vmem %s1, 952
  %v979 = vld [vmem:[%s978] sm:$0xff]
  %980 = vst [vmem:[%s977] sm:$0xff] %v979
  %s981 = scalar_lea.vmem %s4, 960
  %s982 = scalar_lea.vmem %s1, 960
  %v983 = vld [vmem:[%s982] sm:$0xff]
  %984 = vst [vmem:[%s981] sm:$0xff] %v983
  %s985 = scalar_lea.vmem %s4, 968
  %s986 = scalar_lea.vmem %s1, 968
  %v987 = vld [vmem:[%s986] sm:$0xff]
  %988 = vst [vmem:[%s985] sm:$0xff] %v987
  %s989 = scalar_lea.vmem %s4, 976
  %s990 = scalar_lea.vmem %s1, 976
  %v991 = vld [vmem:[%s990] sm:$0xff]
  %992 = vst [vmem:[%s989] sm:$0xff] %v991
  %s993 = scalar_lea.vmem %s4, 984
  %s994 = scalar_lea.vmem %s1, 984
  %v995 = vld [vmem:[%s994] sm:$0xff]
  %996 = vst [vmem:[%s993] sm:$0xff] %v995
  %s997 = scalar_lea.vmem %s4, 992
  %s998 = scalar_lea.vmem %s1, 992
  %v999 = vld [vmem:[%s998] sm:$0xff]
  %1000 = vst [vmem:[%s997] sm:$0xff] %v999

// kernel: mlp_complex_forward.1
$region0: #{mlp_complex_forward.1}
  #allocation0 [shape = 'u32[]', space=smem, size = 0x4, offset = 0x4, fixed_abs, tag = 'smem constant byte address 0x4 - core index']
  #allocation1 [shape = 'u32[144,128]{1,0:T(1,128)}', space=vmem, size = 0x12000, scoped, tag = 'internal scratch']
  %s0 = inlined_call_operand.vmem [shape: bf16[1024,16], index: 0, kind: input, shape index: {}]
  %s1 = inlined_call_operand.vmem [shape: bf16[16,128], index: 1, kind: input, shape index: {}]
  %s2 = inlined_call_operand.vmem [shape: f32[1,128], index: 2, kind: input, shape index: {}]
  %s3 = inlined_call_operand.vmem [shape: bf16[128,128], index: 3, kind: input, shape index: {}]
  %s4 = inlined_call_operand.vmem [shape: f32[1,128], index: 4, kind: input, shape index: {}]
  %s5 = inlined_call_operand.vmem [shape: bf16[128,16], index: 5, kind: input, shape index: {}]
  %s6 = inlined_call_operand.vmem [shape: f32[1,16], index: 6, kind: input, shape index: {}]
  %s7 = inlined_call_operand.vmem [shape: f32[1024,16], index: 7, kind: output, shape index: {}]
  %s8 = sld [smem:[#allocation0]]
  $region61: #{mlp_complex_forward.1} parent=0
    _
  %s10 = ssub.s32 1, %s8
  %s11 = scalar_select 0, %s10, %s8
  loop: start=0, step=1, limit=4
  $region2: #{mlp_complex_forward.1} parent=0 // loop_pre_header
    _
  $region3: #{mlp_complex_forward.1} parent=0 // loop_header
    %s13 = sphi 0, %s17
    %p14 = scmp.ge.s32.totalorder %s13, 4
    %s23 = sphi 0, %s25
    %s26 = sphi 0, %s23
    %s27 = sphi 0, %s26
    %s43 = sphi 0, %s27
    %s47 = sphi 0, %s47
    %s49 = sphi 0, %s47
    %s50 = sphi 0, %s49
    %s64 = sphi 0, %s50
    %s68 = sphi 0, %s68
    %s70 = sphi 0, %s68
    %s71 = sphi 0, %s70
    %s85 = sphi 0, %s71
    %s89 = sphi 0, %s89
    %s91 = sphi 0, %s89
    %s92 = sphi 0, %s91
    %s106 = sphi 0, %s92
    %s110 = sphi 0, %s110
    %s112 = sphi 0, %s110
    %s113 = sphi 0, %s112
    %s127 = sphi 0, %s113
    %s131 = sphi 0, %s131
    %s133 = sphi 0, %s131
    %s134 = sphi 0, %s133
    %s148 = sphi 0, %s134
    %s152 = sphi 0, %s152
    %s154 = sphi 0, %s152
    %s155 = sphi 0, %s154
    %s169 = sphi 0, %s155
    %s175 = sphi 0, %s177
    %s178 = sphi 0, %s175
    %s179 = sphi 0, %s178
    %s195 = sphi 0, %s179
  $region4: #{mlp_complex_forward.1} parent=0 // loop_header_branch
    %16 = sbr.rel (%p14) target = $region8
  $region5: #{mlp_complex_forward.1} parent=0 // loop_body
    %s18 = ssub.s32 %s13, 1
    %s19 = ssub.s32 %s13, 2
    %s20 = sadd.s32 %s13, 1
    %s21 = ssub.s32 %s13, %s20
    %p22 = scmp.eq.s32.totalorder %s21, 0
    %s24 = sadd.s32 %s23, 1
    %s25 = scalar_select %p22, %s23, %s24
    %p28 = pneg %p22
    %p29 = scmp.eq.s32.totalorder %s13, 1
    %p30 = por %p28, %p29
    %p31 = scmp.ne.s32.totalorder %s23, %s26
    %p32 = scmp.eq.s32.totalorder %s13, 0
    %p33 = por %p31, %p32
    %p34 = scmp.ne.s32.totalorder %s23, %s26
    %p35 = scmp.eq.s32.totalorder %s18, 1
    %p36 = por %p34, %p35
    %p37 = scmp.ne.s32.totalorder %s26, %s27
    %p38 = scmp.eq.s32.totalorder %s18, 0
    %p39 = por %p37, %p38
    %p40 = scmp.ne.s32.totalorder %s26, %s27
    %p41 = scmp.eq.s32.totalorder %s19, 1
    %p42 = por %p40, %p41
    %p44 = scmp.ne.s32.totalorder %s27, %s43
    %p45 = scmp.eq.s32.totalorder %s19, 0
    %p46 = por %p44, %p45
    %s48 = sadd.s32 %s47, 1
    %p51 = scmp.eq.s32.totalorder %s13, 1
    %p52 = scmp.ne.s32.totalorder %s47, %s49
    %p53 = scmp.eq.s32.totalorder %s13, 0
    %p54 = por %p52, %p53
    %p55 = scmp.ne.s32.totalorder %s47, %s49
    %p56 = scmp.eq.s32.totalorder %s18, 1
    %p57 = por %p55, %p56
    %p58 = scmp.ne.s32.totalorder %s49, %s50
    %p59 = scmp.eq.s32.totalorder %s18, 0
    %p60 = por %p58, %p59
    %p61 = scmp.ne.s32.totalorder %s49, %s50
    %p62 = scmp.eq.s32.totalorder %s19, 1
    %p63 = por %p61, %p62
    %p65 = scmp.ne.s32.totalorder %s50, %s64
    %p66 = scmp.eq.s32.totalorder %s19, 0
    %p67 = por %p65, %p66
    %s69 = sadd.s32 %s68, 1
    %p72 = scmp.eq.s32.totalorder %s13, 1
    %p73 = scmp.ne.s32.totalorder %s68, %s70
    %p74 = scmp.eq.s32.totalorder %s13, 0
    %p75 = por %p73, %p74
    %p76 = scmp.ne.s32.totalorder %s68, %s70
    %p77 = scmp.eq.s32.totalorder %s18, 1
    %p78 = por %p76, %p77
    %p79 = scmp.ne.s32.totalorder %s70, %s71
    %p80 = scmp.eq.s32.totalorder %s18, 0
    %p81 = por %p79, %p80
    %p82 = scmp.ne.s32.totalorder %s70, %s71
    %p83 = scmp.eq.s32.totalorder %s19, 1
    %p84 = por %p82, %p83
    %p86 = scmp.ne.s32.totalorder %s71, %s85
    %p87 = scmp.eq.s32.totalorder %s19, 0
    %p88 = por %p86, %p87
    %s90 = sadd.s32 %s89, 1
    %p93 = scmp.eq.s32.totalorder %s13, 1
    %p94 = scmp.ne.s32.totalorder %s89, %s91
    %p95 = scmp.eq.s32.totalorder %s13, 0
    %p96 = por %p94, %p95
    %p97 = scmp.ne.s32.totalorder %s89, %s91
    %p98 = scmp.eq.s32.totalorder %s18, 1
    %p99 = por %p97, %p98
    %p100 = scmp.ne.s32.totalorder %s91, %s92
    %p101 = scmp.eq.s32.totalorder %s18, 0
    %p102 = por %p100, %p101
    %p103 = scmp.ne.s32.totalorder %s91, %s92
    %p104 = scmp.eq.s32.totalorder %s19, 1
    %p105 = por %p103, %p104
    %p107 = scmp.ne.s32.totalorder %s92, %s106
    %p108 = scmp.eq.s32.totalorder %s19, 0
    %p109 = por %p107, %p108
    %s111 = sadd.s32 %s110, 1
    %p114 = scmp.eq.s32.totalorder %s13, 1
    %p115 = scmp.ne.s32.totalorder %s110, %s112
    %p116 = scmp.eq.s32.totalorder %s13, 0
    %p117 = por %p115, %p116
    %p118 = scmp.ne.s32.totalorder %s110, %s112
    %p119 = scmp.eq.s32.totalorder %s18, 1
    %p120 = por %p118, %p119
    %p121 = scmp.ne.s32.totalorder %s112, %s113
    %p122 = scmp.eq.s32.totalorder %s18, 0
    %p123 = por %p121, %p122
    %p124 = scmp.ne.s32.totalorder %s112, %s113
    %p125 = scmp.eq.s32.totalorder %s19, 1
    %p126 = por %p124, %p125
    %p128 = scmp.ne.s32.totalorder %s113, %s127
    %p129 = scmp.eq.s32.totalorder %s19, 0
    %p130 = por %p128, %p129
    %s132 = sadd.s32 %s131, 1
    %p135 = scmp.eq.s32.totalorder %s13, 1
    %p136 = scmp.ne.s32.totalorder %s131, %s133
    %p137 = scmp.eq.s32.totalorder %s13, 0
    %p138 = por %p136, %p137
    %p139 = scmp.ne.s32.totalorder %s131, %s133
    %p140 = scmp.eq.s32.totalorder %s18, 1
    %p141 = por %p139, %p140
    %p142 = scmp.ne.s32.totalorder %s133, %s134
    %p143 = scmp.eq.s32.totalorder %s18, 0
    %p144 = por %p142, %p143
    %p145 = scmp.ne.s32.totalorder %s133, %s134
    %p146 = scmp.eq.s32.totalorder %s19, 1
    %p147 = por %p145, %p146
    %p149 = scmp.ne.s32.totalorder %s134, %s148
    %p150 = scmp.eq.s32.totalorder %s19, 0
    %p151 = por %p149, %p150
    %s153 = sadd.s32 %s152, 1
    %p156 = scmp.eq.s32.totalorder %s13, 1
    %p157 = scmp.ne.s32.totalorder %s152, %s154
    %p158 = scmp.eq.s32.totalorder %s13, 0
    %p159 = por %p157, %p158
    %p160 = scmp.ne.s32.totalorder %s152, %s154
    %p161 = scmp.eq.s32.totalorder %s18, 1
    %p162 = por %p160, %p161
    %p163 = scmp.ne.s32.totalorder %s154, %s155
    %p164 = scmp.eq.s32.totalorder %s18, 0
    %p165 = por %p163, %p164
    %p166 = scmp.ne.s32.totalorder %s154, %s155
    %p167 = scmp.eq.s32.totalorder %s19, 1
    %p168 = por %p166, %p167
    %p170 = scmp.ne.s32.totalorder %s155, %s169
    %p171 = scmp.eq.s32.totalorder %s19, 0
    %p172 = por %p170, %p171
    %s173 = ssub.s32 %s13, %s20
    %p174 = scmp.eq.s32.totalorder %s173, 0
    %s176 = sadd.s32 %s175, 1
    %s177 = scalar_select %p174, %s175, %s176
    %p180 = pneg %p174
    %p181 = scmp.eq.s32.totalorder %s13, 1
    %p182 = por %p180, %p181
    %p183 = scmp.ne.s32.totalorder %s175, %s178
    %p184 = scmp.eq.s32.totalorder %s13, 0
    %p185 = por %p183, %p184
    %p186 = scmp.ne.s32.totalorder %s175, %s178
    %p187 = scmp.eq.s32.totalorder %s18, 1
    %p188 = por %p186, %p187
    %p189 = scmp.ne.s32.totalorder %s178, %s179
    %p190 = scmp.eq.s32.totalorder %s18, 0
    %p191 = por %p189, %p190
    %p192 = scmp.ne.s32.totalorder %s178, %s179
    %p193 = scmp.eq.s32.totalorder %s19, 1
    %p194 = por %p192, %p193
    %p196 = scmp.ne.s32.totalorder %s179, %s195
    %p197 = scmp.eq.s32.totalorder %s19, 0
    %p198 = por %p196, %p197
    %p199 = scmp.le.s32.totalorder 1, %s13
    %p200 = scmp.lt.s32.totalorder %s13, 3
    %p201 = pnand %p199, %p200
    %p202 = pneg %p201
    // Predicated region
    $region9: #{mlp_complex_forward.1} parent=5 // pred_check
      _
    $region10: #{mlp_complex_forward.1} parent=5 // pred_check_branch
      %204 = sbr.rel (%p201) target = $region12
    $region11: #{mlp_complex_forward.1} parent=5 // pred_region
      %s205 = ssub.s32 %s13, 1
      // Predicated region
      $region13: #{mlp_complex_forward.1} parent=11 // pred_check
        %p206 = pneg %p60
      $region14: #{mlp_complex_forward.1} parent=11 // pred_check_branch
        %208 = sbr.rel (%p206) target = $region16
      $region15: #{mlp_complex_forward.1} parent=11 // pred_region
        _
      $region16: #{mlp_complex_forward.1} parent=11 // pred_fallthru
        _
      // Predicated region
      $region17: #{mlp_complex_forward.1} parent=11 // pred_check
        %p209 = pneg %p81
      $region18: #{mlp_complex_forward.1} parent=11 // pred_check_branch
        %211 = sbr.rel (%p209) target = $region20
      $region19: #{mlp_complex_forward.1} parent=11 // pred_region
        _
      $region20: #{mlp_complex_forward.1} parent=11 // pred_fallthru
        _
      // Predicated region
      $region21: #{mlp_complex_forward.1} parent=11 // pred_check
        %p212 = pneg %p102
      $region22: #{mlp_complex_forward.1} parent=11 // pred_check_branch
        %214 = sbr.rel (%p212) target = $region24
      $region23: #{mlp_complex_forward.1} parent=11 // pred_region
        _
      $region24: #{mlp_complex_forward.1} parent=11 // pred_fallthru
        _
      // Predicated region
      $region25: #{mlp_complex_forward.1} parent=11 // pred_check
        %p215 = pneg %p123
      $region26: #{mlp_complex_forward.1} parent=11 // pred_check_branch
        %217 = sbr.rel (%p215) target = $region28
      $region27: #{mlp_complex_forward.1} parent=11 // pred_region
        _
      $region28: #{mlp_complex_forward.1} parent=11 // pred_fallthru
        _
      // Predicated region
      $region29: #{mlp_complex_forward.1} parent=11 // pred_check
        %p218 = pneg %p144
      $region30: #{mlp_complex_forward.1} parent=11 // pred_check_branch
        %220 = sbr.rel (%p218) target = $region32
      $region31: #{mlp_complex_forward.1} parent=11 // pred_region
        _
      $region32: #{mlp_complex_forward.1} parent=11 // pred_fallthru
        _
      // Predicated region
      $region33: #{mlp_complex_forward.1} parent=11 // pred_check
        %p221 = pneg %p165
      $region34: #{mlp_complex_forward.1} parent=11 // pred_check_branch
        %223 = sbr.rel (%p221) target = $region36
      $region35: #{mlp_complex_forward.1} parent=11 // pred_region
        _
      $region36: #{mlp_complex_forward.1} parent=11 // pred_fallthru
        _
    $region12: #{mlp_complex_forward.1} parent=5 // pred_fallthru
      _
    %p224 = scmp.lt.s32.totalorder %s13, 2
    // Predicated region
    $region37: #{mlp_complex_forward.1} parent=5 // pred_check
      %p225 = pneg %p224
    $region38: #{mlp_complex_forward.1} parent=5 // pred_check_branch
      %227 = sbr.rel (%p225) target = $region40
    $region39: #{mlp_complex_forward.1} parent=5 // pred_region
      // Predicated region
      $region41: #{mlp_complex_forward.1} parent=39 // pred_check
        %p228 = pneg %p33
      $region42: #{mlp_complex_forward.1} parent=39 // pred_check_branch
        %230 = sbr.rel (%p228) target = $region44
      $region43: #{mlp_complex_forward.1} parent=39 // pred_region
        %s231 = smul.u32 64, %s13
        %p232 = scmp.lt.s32.totalorder %s231, 127
        %s233 = scalar_select %p232, %s231, 127
        %s234 = smul.addr %s233, 4
        %s235 = scalar_lea.vmem %s0, %s234
        %s236 = smul.u32 64, %s13
      $region44: #{mlp_complex_forward.1} parent=39 // pred_fallthru
        _
    $region40: #{mlp_complex_forward.1} parent=5 // pred_fallthru
      _
    %p237 = scmp.le.s32.totalorder 1, %s13
    %p238 = scmp.lt.s32.totalorder %s13, 3
    %p239 = pnand %p237, %p238
    %p240 = pneg %p239
    // Predicated region
    $region45: #{mlp_complex_forward.1} parent=5 // pred_check
      _
    $region46: #{mlp_complex_forward.1} parent=5 // pred_check_branch
      %242 = sbr.rel (%p239) target = $region48
    $region47: #{mlp_complex_forward.1} parent=5 // pred_region
      %s243 = ssub.s32 %s13, 1
      %s244 = smul.u32 64, %s18
      %p245 = scmp.lt.s32.totalorder %s244, 127
      %s246 = scalar_select %p245, %s244, 127
      %s247 = smul.addr %s246, 4
      %s248 = scalar_lea.vmem %s0, %s247
      %p249 = pneg %p39
      %p250 = pneg %p36
      %p251 = pneg %p60
      %p252 = pneg %p57
      %p253 = pneg %p81
      %p254 = pneg %p78
      %p255 = pneg %p102
      %p256 = pneg %p99
      %p257 = pneg %p123
      %p258 = pneg %p120
      %p259 = pneg %p144
      %p260 = pneg %p141
      %p261 = pneg %p165
      %p262 = pneg %p162
      %p263 = pneg %p191
      %p264 = pneg %p188
      %s265 = smul.u32 64, %s18
      %p266 = scmp.lt.s32.totalorder %s265, 127
      %s267 = scalar_select %p266, %s265, 127
      %s268 = smul.addr %s267, 8
      %s269 = scalar_lea.vmem %s7, %s268
      %s270 = smul.u32 64, %s18
      %p271 = scmp.lt.s32.totalorder %s270, 127
      %s272 = scalar_select %p271, %s270, 127
      %s273 = smul.addr %s272, 4
      %s274 = scalar_lea.vmem %s0, %s273
      %s275 = smul.u32 64, %s18
      %s276 = smul.u32 64, %s18
      %p277 = scmp.lt.s32.totalorder %s276, 127
      %s278 = scalar_select %p277, %s276, 127
      %s279 = smul.addr %s278, 8
      %s280 = scalar_lea.vmem %s7, %s279
      %s281 = smul.u32 64, %s18
      %v283 = vld [vmem:[%s274] sm:$0xf]
      %v284 = vld [vmem:[%s274 + $0x4] sm:$0xf]
      %v285 = vld [vmem:[%s274 + $0x8] sm:$0xf]
      %v286 = vld [vmem:[%s274 + $0xc] sm:$0xf]
      %v287 = vld [vmem:[%s274 + $0x10] sm:$0xf]
      %v288 = vld [vmem:[%s274 + $0x14] sm:$0xf]
      %v289 = vld [vmem:[%s274 + $0x18] sm:$0xf]
      %v290 = vld [vmem:[%s274 + $0x1c] sm:$0xf]
      %v291 = vld [vmem:[%s274 + $0x20] sm:$0xf]
      %v292 = vld [vmem:[%s274 + $0x24] sm:$0xf]
      %v293 = vld [vmem:[%s274 + $0x28] sm:$0xf]
      %v294 = vld [vmem:[%s274 + $0x2c] sm:$0xf]
      %v295 = vld [vmem:[%s274 + $0x30] sm:$0xf]
      %v296 = vld [vmem:[%s274 + $0x34] sm:$0xf]
      %v297 = vld [vmem:[%s274 + $0x38] sm:$0xf]
      %v298 = vld [vmem:[%s274 + $0x3c] sm:$0xf]
      %v299 = vld [vmem:[%s274 + $0x40] sm:$0xf]
      %v300 = vld [vmem:[%s274 + $0x44] sm:$0xf]
      %v301 = vld [vmem:[%s274 + $0x48] sm:$0xf]
      %v302 = vld [vmem:[%s274 + $0x4c] sm:$0xf]
      %v303 = vld [vmem:[%s274 + $0x50] sm:$0xf]
      %v304 = vld [vmem:[%s274 + $0x54] sm:$0xf]
      %v305 = vld [vmem:[%s274 + $0x58] sm:$0xf]
      %v306 = vld [vmem:[%s274 + $0x5c] sm:$0xf]
      %v307 = vld [vmem:[%s274 + $0x60] sm:$0xf]
      %v308 = vld [vmem:[%s274 + $0x64] sm:$0xf]
      %v309 = vld [vmem:[%s274 + $0x68] sm:$0xf]
      %v310 = vld [vmem:[%s274 + $0x6c] sm:$0xf]
      %v311 = vld [vmem:[%s274 + $0x70] sm:$0xf]
      %v312 = vld [vmem:[%s274 + $0x74] sm:$0xf]
      %v313 = vld [vmem:[%s274 + $0x78] sm:$0xf]
      %v314 = vld [vmem:[%s274 + $0x7c] sm:$0xf]
      %v315 = vld [vmem:[%s274 + $0x80] sm:$0xf]
      %v316 = vld [vmem:[%s274 + $0x84] sm:$0xf]
      %v317 = vld [vmem:[%s274 + $0x88] sm:$0xf]
      %v318 = vld [vmem:[%s274 + $0x8c] sm:$0xf]
      %v319 = vld [vmem:[%s274 + $0x90] sm:$0xf]
      %v320 = vld [vmem:[%s274 + $0x94] sm:$0xf]
      %v321 = vld [vmem:[%s274 + $0x98] sm:$0xf]
      %v322 = vld [vmem:[%s274 + $0x9c] sm:$0xf]
      %v323 = vld [vmem:[%s274 + $0xa0] sm:$0xf]
      %v324 = vld [vmem:[%s274 + $0xa4] sm:$0xf]
      %v325 = vld [vmem:[%s274 + $0xa8] sm:$0xf]
      %v326 = vld [vmem:[%s274 + $0xac] sm:$0xf]
      %v327 = vld [vmem:[%s274 + $0xb0] sm:$0xf]
      %v328 = vld [vmem:[%s274 + $0xb4] sm:$0xf]
      %v329 = vld [vmem:[%s274 + $0xb8] sm:$0xf]
      %v330 = vld [vmem:[%s274 + $0xbc] sm:$0xf]
      %v331 = vld [vmem:[%s274 + $0xc0] sm:$0xf]
      %v332 = vld [vmem:[%s274 + $0xc4] sm:$0xf]
      %v333 = vld [vmem:[%s274 + $0xc8] sm:$0xf]
      %v334 = vld [vmem:[%s274 + $0xcc] sm:$0xf]
      %v335 = vld [vmem:[%s274 + $0xd0] sm:$0xf]
      %v336 = vld [vmem:[%s274 + $0xd4] sm:$0xf]
      %v337 = vld [vmem:[%s274 + $0xd8] sm:$0xf]
      %v338 = vld [vmem:[%s274 + $0xdc] sm:$0xf]
      %v339 = vld [vmem:[%s274 + $0xe0] sm:$0xf]
      %v340 = vld [vmem:[%s274 + $0xe4] sm:$0xf]
      %v341 = vld [vmem:[%s274 + $0xe8] sm:$0xf]
      %v342 = vld [vmem:[%s274 + $0xec] sm:$0xf]
      %v343 = vld [vmem:[%s274 + $0xf0] sm:$0xf]
      %v344 = vld [vmem:[%s274 + $0xf4] sm:$0xf]
      %v345 = vld [vmem:[%s274 + $0xf8] sm:$0xf]
      %v346 = vld [vmem:[%s274 + $0xfc] sm:$0xf]
      %v347 = vld [vmem:[%s1] sm:$0xf]
      %v348 = vld [vmem:[%s1 + $0x4] sm:$0xf]
      %v349 = vld [vmem:[%s2] sm:$0x1]
      %v351 = vlaneseq
      %v352 = vshrl.u32 %v351, 7
      %v353 = vsub.s32 0, %v352
      %v354 = vrot.slane %v349, %v353
      %v420 = vunpack.c.l.b16 %v283
      %v421 = vunpack.c.l.b16 %v284
      %v422 = vunpack.c.l.b16 %v285
      %v423 = vunpack.c.l.b16 %v286
      %v424 = vunpack.c.l.b16 %v287
      %v425 = vunpack.c.l.b16 %v288
      %v426 = vunpack.c.l.b16 %v289
      %v427 = vunpack.c.l.b16 %v290
      %v428 = vunpack.c.l.b16 %v291
      %v429 = vunpack.c.l.b16 %v292
      %v430 = vunpack.c.l.b16 %v293
      %v431 = vunpack.c.l.b16 %v294
      %v432 = vunpack.c.l.b16 %v295
      %v433 = vunpack.c.l.b16 %v296
      %v434 = vunpack.c.l.b16 %v297
      %v435 = vunpack.c.l.b16 %v298
      %v436 = vunpack.c.l.b16 %v299
      %v437 = vunpack.c.l.b16 %v300
      %v438 = vunpack.c.l.b16 %v301
      %v439 = vunpack.c.l.b16 %v302
      %v440 = vunpack.c.l.b16 %v303
      %v441 = vunpack.c.l.b16 %v304
      %v442 = vunpack.c.l.b16 %v305
      %v443 = vunpack.c.l.b16 %v306
      %v444 = vunpack.c.l.b16 %v307
      %v445 = vunpack.c.l.b16 %v308
      %v446 = vunpack.c.l.b16 %v309
      %v447 = vunpack.c.l.b16 %v310
      %v448 = vunpack.c.l.b16 %v311
      %v449 = vunpack.c.l.b16 %v312
      %v450 = vunpack.c.l.b16 %v313
      %v451 = vunpack.c.l.b16 %v314
      %v452 = vunpack.c.l.b16 %v315
      %v453 = vunpack.c.l.b16 %v316
      %v454 = vunpack.c.l.b16 %v317
      %v455 = vunpack.c.l.b16 %v318
      %v456 = vunpack.c.l.b16 %v319
      %v457 = vunpack.c.l.b16 %v320
      %v458 = vunpack.c.l.b16 %v321
      %v459 = vunpack.c.l.b16 %v322
      %v460 = vunpack.c.l.b16 %v323
      %v461 = vunpack.c.l.b16 %v324
      %v462 = vunpack.c.l.b16 %v325
      %v463 = vunpack.c.l.b16 %v326
      %v464 = vunpack.c.l.b16 %v327
      %v465 = vunpack.c.l.b16 %v328
      %v466 = vunpack.c.l.b16 %v329
      %v467 = vunpack.c.l.b16 %v330
      %v468 = vunpack.c.l.b16 %v331
      %v469 = vunpack.c.l.b16 %v332
      %v470 = vunpack.c.l.b16 %v333
      %v471 = vunpack.c.l.b16 %v334
      %v472 = vunpack.c.l.b16 %v335
      %v473 = vunpack.c.l.b16 %v336
      %v474 = vunpack.c.l.b16 %v337
      %v475 = vunpack.c.l.b16 %v338
      %v476 = vunpack.c.l.b16 %v339
      %v477 = vunpack.c.l.b16 %v340
      %v478 = vunpack.c.l.b16 %v341
      %v479 = vunpack.c.l.b16 %v342
      %v480 = vunpack.c.l.b16 %v343
      %v481 = vunpack.c.l.b16 %v344
      %v482 = vunpack.c.l.b16 %v345
      %v483 = vunpack.c.l.b16 %v346
      %v484 = vpack.c.b16 %v421, %v420
      %v485 = vpack.c.b16 %v423, %v422
      %v486 = vpack.c.b16 %v425, %v424
      %v487 = vpack.c.b16 %v427, %v426
      %v488 = vpack.c.b16 %v429, %v428
      %v489 = vpack.c.b16 %v431, %v430
      %v490 = vpack.c.b16 %v433, %v432
      %v491 = vpack.c.b16 %v435, %v434
      %v492 = vpack.c.b16 %v437, %v436
      %v493 = vpack.c.b16 %v439, %v438
      %v494 = vpack.c.b16 %v441, %v440
      %v495 = vpack.c.b16 %v443, %v442
      %v496 = vpack.c.b16 %v445, %v444
      %v497 = vpack.c.b16 %v447, %v446
      %v498 = vpack.c.b16 %v449, %v448
      %v499 = vpack.c.b16 %v451, %v450
      %v500 = vpack.c.b16 %v453, %v452
      %v501 = vpack.c.b16 %v455, %v454
      %v502 = vpack.c.b16 %v457, %v456
      %v503 = vpack.c.b16 %v459, %v458
      %v504 = vpack.c.b16 %v461, %v460
      %v505 = vpack.c.b16 %v463, %v462
      %v506 = vpack.c.b16 %v465, %v464
      %v507 = vpack.c.b16 %v467, %v466
      %v508 = vpack.c.b16 %v469, %v468
      %v509 = vpack.c.b16 %v471, %v470
      %v510 = vpack.c.b16 %v473, %v472
      %v511 = vpack.c.b16 %v475, %v474
      %v512 = vpack.c.b16 %v477, %v476
      %v513 = vpack.c.b16 %v479, %v478
      %v514 = vpack.c.b16 %v481, %v480
      %v515 = vpack.c.b16 %v483, %v482
      %v518 = vunpack.c.l.b16 %v347
      %v519 = vunpack.c.l.b16 %v348
      %v520 = vpack.c.b16 %v519, %v518
      %vm522 = vcmask 130048
      %v524 = vsel %vm522, %v484, 0
      %v527 = vsel %vm522, %v485, 0
      %v530 = vsel %vm522, %v486, 0
      %v533 = vsel %vm522, %v487, 0
      %v536 = vsel %vm522, %v488, 0
      %v539 = vsel %vm522, %v489, 0
      %v542 = vsel %vm522, %v490, 0
      %v545 = vsel %vm522, %v491, 0
      %v548 = vsel %vm522, %v492, 0
      %v551 = vsel %vm522, %v493, 0
      %v554 = vsel %vm522, %v494, 0
      %v557 = vsel %vm522, %v495, 0
      %v560 = vsel %vm522, %v496, 0
      %v563 = vsel %vm522, %v497, 0
      %v566 = vsel %vm522, %v498, 0
      %v569 = vsel %vm522, %v499, 0
      %v572 = vsel %vm522, %v500, 0
      %v575 = vsel %vm522, %v501, 0
      %v578 = vsel %vm522, %v502, 0
      %v581 = vsel %vm522, %v503, 0
      %v584 = vsel %vm522, %v504, 0
      %v587 = vsel %vm522, %v505, 0
      %v590 = vsel %vm522, %v506, 0
      %v593 = vsel %vm522, %v507, 0
      %v596 = vsel %vm522, %v508, 0
      %v599 = vsel %vm522, %v509, 0
      %v602 = vsel %vm522, %v510, 0
      %v605 = vsel %vm522, %v511, 0
      %v608 = vsel %vm522, %v512, 0
      %v611 = vsel %vm522, %v513, 0
      %v614 = vsel %vm522, %v514, 0
      %v617 = vsel %vm522, %v515, 0
      %619 = vmatprep.subr.bf16.mxu0 0
      %620 = vmatpush1.bf16.msra.mxu0 0
      %621 = vmatprep.subr.bf16.mxu0 0
      %622 = vmatpush1.bf16.msra.mxu0 0
      %623 = vmatprep.subr.bf16.mxu0 0
      %624 = vmatpush1.bf16.msra.mxu0 0
      %625 = vmatprep.subr.bf16.mxu0 0
      %626 = vmatpush1.bf16.msra.mxu0 0
      %627 = vmatprep.subr.bf16.mxu0 0
      %628 = vmatpush1.bf16.msra.mxu0 0
      %629 = vmatprep.subr.bf16.mxu0 0
      %630 = vmatpush1.bf16.msra.mxu0 0
      %631 = vmatprep.subr.bf16.mxu0 0
      %632 = vmatpush1.bf16.msra.mxu0 0
      %633 = vmatprep.subr.bf16.mxu0 0
      %634 = vmatpush1.bf16.msra.mxu0 %v520
      %635 = vmatprep.subr.bf16.mxu0 0
      %636 = vmatpush2.bf16.msra.mxu0 0
      %637 = vmatprep.subr.bf16.mxu0 0
      %638 = vmatpush2.bf16.msra.mxu0 0
      %639 = vmatprep.subr.bf16.mxu0 0
      %640 = vmatpush2.bf16.msra.mxu0 0
      %641 = vmatprep.subr.bf16.mxu0 0
      %642 = vmatpush2.bf16.msra.mxu0 0
      %643 = vmatprep.subr.bf16.mxu0 0
      %644 = vmatpush2.bf16.msra.mxu0 0
      %645 = vmatprep.subr.bf16.mxu0 0
      %646 = vmatpush2.bf16.msra.mxu0 0
      %647 = vmatprep.subr.bf16.mxu0 0
      %648 = vmatpush2.bf16.msra.mxu0 0
      %649 = vmatprep.subr.bf16.mxu0 0
      %650 = vmatpush2.bf16.msra.mxu0 0
      %651 = vmatprep.mubr.bf16.mxu0 0
      %652 = vmatmul.mubr.bf16.gmra.mxu0 %v524
      %v653 = vpop.f32.mrf.mxu0
      %v654 = vadd.f32 %v354, %v653
      %v655 = vpop.f32.mrf.mxu0
      %v656 = vpop.f32.mrf.mxu0
      %v657 = vadd.f32 %v354, %v656
      %v658 = vpop.f32.mrf.mxu0
      %659 = vmatprep.mubr.bf16.mxu0 0
      %660 = vmatmul.mubr.bf16.gmra.mxu0 %v527
      %v661 = vpop.f32.mrf.mxu0
      %v662 = vadd.f32 %v354, %v661
      %v663 = vpop.f32.mrf.mxu0
      %v664 = vpop.f32.mrf.mxu0
      %v665 = vadd.f32 %v354, %v664
      %v666 = vpop.f32.mrf.mxu0
      %667 = vmatprep.mubr.bf16.mxu0 0
      %668 = vmatmul.mubr.bf16.gmra.mxu0 %v530
      %v669 = vpop.f32.mrf.mxu0
      %v670 = vadd.f32 %v354, %v669
      %v671 = vpop.f32.mrf.mxu0
      %v672 = vpop.f32.mrf.mxu0
      %v673 = vadd.f32 %v354, %v672
      %v674 = vpop.f32.mrf.mxu0
      %675 = vmatprep.mubr.bf16.mxu0 0
      %676 = vmatmul.mubr.bf16.gmra.mxu0 %v533
      %v677 = vpop.f32.mrf.mxu0
      %v678 = vadd.f32 %v354, %v677
      %v679 = vpop.f32.mrf.mxu0
      %v680 = vpop.f32.mrf.mxu0
      %v681 = vadd.f32 %v354, %v680
      %v682 = vpop.f32.mrf.mxu0
      %683 = vmatprep.mubr.bf16.mxu0 0
      %684 = vmatmul.mubr.bf16.gmra.mxu0 %v536
      %v685 = vpop.f32.mrf.mxu0
      %v686 = vadd.f32 %v354, %v685
      %v687 = vpop.f32.mrf.mxu0
      %v688 = vpop.f32.mrf.mxu0
      %v689 = vadd.f32 %v354, %v688
      %v690 = vpop.f32.mrf.mxu0
      %691 = vmatprep.mubr.bf16.mxu0 0
      %692 = vmatmul.mubr.bf16.gmra.mxu0 %v539
      %v693 = vpop.f32.mrf.mxu0
      %v694 = vadd.f32 %v354, %v693
      %v695 = vpop.f32.mrf.mxu0
      %v696 = vpop.f32.mrf.mxu0
      %v697 = vadd.f32 %v354, %v696
      %v698 = vpop.f32.mrf.mxu0
      %699 = vmatprep.mubr.bf16.mxu0 0
      %700 = vmatmul.mubr.bf16.gmra.mxu0 %v542
      %v701 = vpop.f32.mrf.mxu0
      %v702 = vadd.f32 %v354, %v701
      %v703 = vpop.f32.mrf.mxu0
      %v704 = vpop.f32.mrf.mxu0
      %v705 = vadd.f32 %v354, %v704
      %v706 = vpop.f32.mrf.mxu0
      %707 = vmatprep.mubr.bf16.mxu0 0
      %708 = vmatmul.mubr.bf16.gmra.mxu0 %v545
      %v709 = vpop.f32.mrf.mxu0
      %v710 = vadd.f32 %v354, %v709
      %v711 = vpop.f32.mrf.mxu0
      %v712 = vpop.f32.mrf.mxu0
      %v713 = vadd.f32 %v354, %v712
      %v714 = vpop.f32.mrf.mxu0
      %715 = vmatprep.mubr.bf16.mxu0 0
      %716 = vmatmul.mubr.bf16.gmra.mxu0 %v548
      %v717 = vpop.f32.mrf.mxu0
      %v718 = vadd.f32 %v354, %v717
      %v719 = vpop.f32.mrf.mxu0
      %v720 = vpop.f32.mrf.mxu0
      %v721 = vadd.f32 %v354, %v720
      %v722 = vpop.f32.mrf.mxu0
      %723 = vmatprep.mubr.bf16.mxu0 0
      %724 = vmatmul.mubr.bf16.gmra.mxu0 %v551
      %v725 = vpop.f32.mrf.mxu0
      %v726 = vadd.f32 %v354, %v725
      %v727 = vpop.f32.mrf.mxu0
      %v728 = vpop.f32.mrf.mxu0
      %v729 = vadd.f32 %v354, %v728
      %v730 = vpop.f32.mrf.mxu0
      %731 = vmatprep.mubr.bf16.mxu0 0
      %732 = vmatmul.mubr.bf16.gmra.mxu0 %v554
      %v733 = vpop.f32.mrf.mxu0
      %v734 = vadd.f32 %v354, %v733
      %v735 = vpop.f32.mrf.mxu0
      %v736 = vpop.f32.mrf.mxu0
      %v737 = vadd.f32 %v354, %v736
      %v738 = vpop.f32.mrf.mxu0
      %739 = vmatprep.mubr.bf16.mxu0 0
      %740 = vmatmul.mubr.bf16.gmra.mxu0 %v557
      %v741 = vpop.f32.mrf.mxu0
      %v742 = vadd.f32 %v354, %v741
      %v743 = vpop.f32.mrf.mxu0
      %v744 = vpop.f32.mrf.mxu0
      %v745 = vadd.f32 %v354, %v744
      %v746 = vpop.f32.mrf.mxu0
      %747 = vmatprep.mubr.bf16.mxu0 0
      %748 = vmatmul.mubr.bf16.gmra.mxu0 %v560
      %v749 = vpop.f32.mrf.mxu0
      %v750 = vadd.f32 %v354, %v749
      %v751 = vpop.f32.mrf.mxu0
      %v752 = vpop.f32.mrf.mxu0
      %v753 = vadd.f32 %v354, %v752
      %v754 = vpop.f32.mrf.mxu0
      %755 = vmatprep.mubr.bf16.mxu0 0
      %756 = vmatmul.mubr.bf16.gmra.mxu0 %v563
      %v757 = vpop.f32.mrf.mxu0
      %v758 = vadd.f32 %v354, %v757
      %v759 = vpop.f32.mrf.mxu0
      %v760 = vpop.f32.mrf.mxu0
      %v761 = vadd.f32 %v354, %v760
      %v762 = vpop.f32.mrf.mxu0
      %763 = vmatprep.mubr.bf16.mxu0 0
      %764 = vmatmul.mubr.bf16.gmra.mxu0 %v566
      %v765 = vpop.f32.mrf.mxu0
      %v766 = vadd.f32 %v354, %v765
      %v767 = vpop.f32.mrf.mxu0
      %v768 = vpop.f32.mrf.mxu0
      %v769 = vadd.f32 %v354, %v768
      %v770 = vpop.f32.mrf.mxu0
      %771 = vmatprep.mubr.bf16.mxu0 0
      %772 = vmatmul.mubr.bf16.gmra.mxu0 %v569
      %v773 = vpop.f32.mrf.mxu0
      %v774 = vadd.f32 %v354, %v773
      %v775 = vpop.f32.mrf.mxu0
      %v776 = vpop.f32.mrf.mxu0
      %v777 = vadd.f32 %v354, %v776
      %v778 = vpop.f32.mrf.mxu0
      %779 = vmatprep.mubr.bf16.mxu0 0
      %780 = vmatmul.mubr.bf16.gmra.mxu0 %v572
      %v781 = vpop.f32.mrf.mxu0
      %v782 = vadd.f32 %v354, %v781
      %v783 = vpop.f32.mrf.mxu0
      %v784 = vpop.f32.mrf.mxu0
      %v785 = vadd.f32 %v354, %v784
      %v786 = vpop.f32.mrf.mxu0
      %787 = vmatprep.mubr.bf16.mxu0 0
      %788 = vmatmul.mubr.bf16.gmra.mxu0 %v575
      %v789 = vpop.f32.mrf.mxu0
      %v790 = vadd.f32 %v354, %v789
      %v791 = vpop.f32.mrf.mxu0
      %v792 = vpop.f32.mrf.mxu0
      %v793 = vadd.f32 %v354, %v792
      %v794 = vpop.f32.mrf.mxu0
      %795 = vmatprep.mubr.bf16.mxu0 0
      %796 = vmatmul.mubr.bf16.gmra.mxu0 %v578
      %v797 = vpop.f32.mrf.mxu0
      %v798 = vadd.f32 %v354, %v797
      %v799 = vpop.f32.mrf.mxu0
      %v800 = vpop.f32.mrf.mxu0
      %v801 = vadd.f32 %v354, %v800
      %v802 = vpop.f32.mrf.mxu0
      %803 = vmatprep.mubr.bf16.mxu0 0
      %804 = vmatmul.mubr.bf16.gmra.mxu0 %v581
      %v805 = vpop.f32.mrf.mxu0
      %v806 = vadd.f32 %v354, %v805
      %v807 = vpop.f32.mrf.mxu0
      %v808 = vpop.f32.mrf.mxu0
      %v809 = vadd.f32 %v354, %v808
      %v810 = vpop.f32.mrf.mxu0
      %811 = vmatprep.mubr.bf16.mxu0 0
      %812 = vmatmul.mubr.bf16.gmra.mxu0 %v584
      %v813 = vpop.f32.mrf.mxu0
      %v814 = vadd.f32 %v354, %v813
      %v815 = vpop.f32.mrf.mxu0
      %v816 = vpop.f32.mrf.mxu0
      %v817 = vadd.f32 %v354, %v816
      %v818 = vpop.f32.mrf.mxu0
      %819 = vmatprep.mubr.bf16.mxu0 0
      %820 = vmatmul.mubr.bf16.gmra.mxu0 %v587
      %v821 = vpop.f32.mrf.mxu0
      %v822 = vadd.f32 %v354, %v821
      %v823 = vpop.f32.mrf.mxu0
      %v824 = vpop.f32.mrf.mxu0
      %v825 = vadd.f32 %v354, %v824
      %v826 = vpop.f32.mrf.mxu0
      %827 = vmatprep.mubr.bf16.mxu0 0
      %828 = vmatmul.mubr.bf16.gmra.mxu0 %v590
      %v829 = vpop.f32.mrf.mxu0
      %v830 = vadd.f32 %v354, %v829
      %v831 = vpop.f32.mrf.mxu0
      %v832 = vpop.f32.mrf.mxu0
      %v833 = vadd.f32 %v354, %v832
      %v834 = vpop.f32.mrf.mxu0
      %835 = vmatprep.mubr.bf16.mxu0 0
      %836 = vmatmul.mubr.bf16.gmra.mxu0 %v593
      %v837 = vpop.f32.mrf.mxu0
      %v838 = vadd.f32 %v354, %v837
      %v839 = vpop.f32.mrf.mxu0
      %v840 = vpop.f32.mrf.mxu0
      %v841 = vadd.f32 %v354, %v840
      %v842 = vpop.f32.mrf.mxu0
      %843 = vmatprep.mubr.bf16.mxu0 0
      %844 = vmatmul.mubr.bf16.gmra.mxu0 %v596
      %v845 = vpop.f32.mrf.mxu0
      %v846 = vadd.f32 %v354, %v845
      %v847 = vpop.f32.mrf.mxu0
      %v848 = vpop.f32.mrf.mxu0
      %v849 = vadd.f32 %v354, %v848
      %v850 = vpop.f32.mrf.mxu0
      %851 = vmatprep.mubr.bf16.mxu0 0
      %852 = vmatmul.mubr.bf16.gmra.mxu0 %v599
      %v853 = vpop.f32.mrf.mxu0
      %v854 = vadd.f32 %v354, %v853
      %v855 = vpop.f32.mrf.mxu0
      %v856 = vpop.f32.mrf.mxu0
      %v857 = vadd.f32 %v354, %v856
      %v858 = vpop.f32.mrf.mxu0
      %859 = vmatprep.mubr.bf16.mxu0 0
      %860 = vmatmul.mubr.bf16.gmra.mxu0 %v602
      %v861 = vpop.f32.mrf.mxu0
      %v862 = vadd.f32 %v354, %v861
      %v863 = vpop.f32.mrf.mxu0
      %v864 = vpop.f32.mrf.mxu0
      %v865 = vadd.f32 %v354, %v864
      %v866 = vpop.f32.mrf.mxu0
      %867 = vmatprep.mubr.bf16.mxu0 0
      %868 = vmatmul.mubr.bf16.gmra.mxu0 %v605
      %v869 = vpop.f32.mrf.mxu0
      %v870 = vadd.f32 %v354, %v869
      %v871 = vpop.f32.mrf.mxu0
      %v872 = vpop.f32.mrf.mxu0
      %v873 = vadd.f32 %v354, %v872
      %v874 = vpop.f32.mrf.mxu0
      %875 = vmatprep.mubr.bf16.mxu0 0
      %876 = vmatmul.mubr.bf16.gmra.mxu0 %v608
      %v877 = vpop.f32.mrf.mxu0
      %v878 = vadd.f32 %v354, %v877
      %v879 = vpop.f32.mrf.mxu0
      %v880 = vpop.f32.mrf.mxu0
      %v881 = vadd.f32 %v354, %v880
      %v882 = vpop.f32.mrf.mxu0
      %883 = vmatprep.mubr.bf16.mxu0 0
      %884 = vmatmul.mubr.bf16.gmra.mxu0 %v611
      %v885 = vpop.f32.mrf.mxu0
      %v886 = vadd.f32 %v354, %v885
      %v887 = vpop.f32.mrf.mxu0
      %v888 = vpop.f32.mrf.mxu0
      %v889 = vadd.f32 %v354, %v888
      %v890 = vpop.f32.mrf.mxu0
      %891 = vmatprep.mubr.bf16.mxu0 0
      %892 = vmatmul.mubr.bf16.gmra.mxu0 %v614
      %v893 = vpop.f32.mrf.mxu0
      %v894 = vadd.f32 %v354, %v893
      %v895 = vpop.f32.mrf.mxu0
      %v896 = vpop.f32.mrf.mxu0
      %v897 = vadd.f32 %v354, %v896
      %v898 = vpop.f32.mrf.mxu0
      %899 = vmatprep.mubr.bf16.mxu0 0
      %900 = vmatmul.mubr.bf16.gmra.mxu0 %v617
      %v901 = vpop.f32.mrf.mxu0
      %v902 = vadd.f32 %v354, %v901
      %v903 = vpop.f32.mrf.mxu0
      %v904 = vpop.f32.mrf.mxu0
      %v905 = vadd.f32 %v354, %v904
      %v906 = vpop.f32.mrf.mxu0
      %907 = vdwg.mxu0
      %v908 = vtanh.pop %v654
      %v909 = vtanh.pop %v657
      %v910 = vtanh.pop %v662
      %v911 = vtanh.pop %v665
      %v912 = vtanh.pop %v670
      %v913 = vtanh.pop %v673
      %v914 = vtanh.pop %v678
      %v915 = vtanh.pop %v681
      %v916 = vtanh.pop %v686
      %v917 = vtanh.pop %v689
      %v918 = vtanh.pop %v694
      %v919 = vtanh.pop %v697
      %v920 = vtanh.pop %v702
      %v921 = vtanh.pop %v705
      %v922 = vtanh.pop %v710
      %v923 = vtanh.pop %v713
      %v924 = vtanh.pop %v718
      %v925 = vtanh.pop %v721
      %v926 = vtanh.pop %v726
      %v927 = vtanh.pop %v729
      %v928 = vtanh.pop %v734
      %v929 = vtanh.pop %v737
      %v930 = vtanh.pop %v742
      %v931 = vtanh.pop %v745
      %v932 = vtanh.pop %v750
      %v933 = vtanh.pop %v753
      %v934 = vtanh.pop %v758
      %v935 = vtanh.pop %v761
      %v936 = vtanh.pop %v766
      %v937 = vtanh.pop %v769
      %v938 = vtanh.pop %v774
      %v939 = vtanh.pop %v777
      %v940 = vtanh.pop %v782
      %v941 = vtanh.pop %v785
      %v942 = vtanh.pop %v790
      %v943 = vtanh.pop %v793
      %v944 = vtanh.pop %v798
      %v945 = vtanh.pop %v801
      %v946 = vtanh.pop %v806
      %v947 = vtanh.pop %v809
      %v948 = vtanh.pop %v814
      %v949 = vtanh.pop %v817
      %v950 = vtanh.pop %v822
      %v951 = vtanh.pop %v825
      %v952 = vtanh.pop %v830
      %v953 = vtanh.pop %v833
      %v954 = vtanh.pop %v838
      %v955 = vtanh.pop %v841
      %v956 = vtanh.pop %v846
      %v957 = vtanh.pop %v849
      %v958 = vtanh.pop %v854
      %v959 = vtanh.pop %v857
      %v960 = vtanh.pop %v862
      %v961 = vtanh.pop %v865
      %v962 = vtanh.pop %v870
      %v963 = vtanh.pop %v873
      %v964 = vtanh.pop %v878
      %v965 = vtanh.pop %v881
      %v966 = vtanh.pop %v886
      %v967 = vtanh.pop %v889
      %v968 = vtanh.pop %v894
      %v969 = vtanh.pop %v897
      %v970 = vtanh.pop %v902
      %v971 = vtanh.pop %v905
      %v972 = vpack.c.bf16 %v909, %v908
      %v973 = vpack.c.bf16 %v911, %v910
      %v974 = vpack.c.bf16 %v913, %v912
      %v975 = vpack.c.bf16 %v915, %v914
      %v976 = vpack.c.bf16 %v917, %v916
      %v977 = vpack.c.bf16 %v919, %v918
      %v978 = vpack.c.bf16 %v921, %v920
      %v979 = vpack.c.bf16 %v923, %v922
      %v980 = vpack.c.bf16 %v925, %v924
      %v981 = vpack.c.bf16 %v927, %v926
      %v982 = vpack.c.bf16 %v929, %v928
      %v983 = vpack.c.bf16 %v931, %v930
      %v984 = vpack.c.bf16 %v933, %v932
      %v985 = vpack.c.bf16 %v935, %v934
      %v986 = vpack.c.bf16 %v937, %v936
      %v987 = vpack.c.bf16 %v939, %v938
      %v988 = vpack.c.bf16 %v941, %v940
      %v989 = vpack.c.bf16 %v943, %v942
      %v990 = vpack.c.bf16 %v945, %v944
      %v991 = vpack.c.bf16 %v947, %v946
      %v992 = vpack.c.bf16 %v949, %v948
      %v993 = vpack.c.bf16 %v951, %v950
      %v994 = vpack.c.bf16 %v953, %v952
      %v995 = vpack.c.bf16 %v955, %v954
      %v996 = vpack.c.bf16 %v957, %v956
      %v997 = vpack.c.bf16 %v959, %v958
      %v998 = vpack.c.bf16 %v961, %v960
      %v999 = vpack.c.bf16 %v963, %v962
      %v1000 = vpack.c.bf16 %v965, %v964
      %v1001 = vpack.c.bf16 %v967, %v966
      %v1002 = vpack.c.bf16 %v969, %v968
      %v1003 = vpack.c.bf16 %v971, %v970
      %v1004 = vld [vmem:[%s3] sm:$0xf]
      %v1005 = vld [vmem:[%s3 + $0x4] sm:$0xf]
      %v1006 = vld [vmem:[%s3 + $0x8] sm:$0xf]
      %v1007 = vld [vmem:[%s3 + $0xc] sm:$0xf]
      %v1008 = vld [vmem:[%s3 + $0x10] sm:$0xf]
      %v1009 = vld [vmem:[%s3 + $0x14] sm:$0xf]
      %v1010 = vld [vmem:[%s3 + $0x18] sm:$0xf]
      %v1011 = vld [vmem:[%s3 + $0x1c] sm:$0xf]
      %v1012 = vld [vmem:[%s3 + $0x20] sm:$0xf]
      %v1013 = vld [vmem:[%s3 + $0x24] sm:$0xf]
      %v1014 = vld [vmem:[%s3 + $0x28] sm:$0xf]
      %v1015 = vld [vmem:[%s3 + $0x2c] sm:$0xf]
      %v1016 = vld [vmem:[%s3 + $0x30] sm:$0xf]
      %v1017 = vld [vmem:[%s3 + $0x34] sm:$0xf]
      %v1018 = vld [vmem:[%s3 + $0x38] sm:$0xf]
      %v1019 = vld [vmem:[%s3 + $0x3c] sm:$0xf]
      %v1020 = vld [vmem:[%s4] sm:$0x1]
      %v1022 = vlaneseq
      %v1023 = vshrl.u32 %v1022, 7
      %v1024 = vsub.s32 0, %v1023
      %v1025 = vrot.slane %v1020, %v1024
      %v1043 = vunpack.c.l.b16 %v1004
      %v1044 = vunpack.c.l.b16 %v1005
      %v1045 = vunpack.c.l.b16 %v1006
      %v1046 = vunpack.c.l.b16 %v1007
      %v1047 = vunpack.c.l.b16 %v1008
      %v1048 = vunpack.c.l.b16 %v1009
      %v1049 = vunpack.c.l.b16 %v1010
      %v1050 = vunpack.c.l.b16 %v1011
      %v1051 = vunpack.c.l.b16 %v1012
      %v1052 = vunpack.c.l.b16 %v1013
      %v1053 = vunpack.c.l.b16 %v1014
      %v1054 = vunpack.c.l.b16 %v1015
      %v1055 = vunpack.c.l.b16 %v1016
      %v1056 = vunpack.c.l.b16 %v1017
      %v1057 = vunpack.c.l.b16 %v1018
      %v1058 = vunpack.c.l.b16 %v1019
      %v1059 = vpack.c.b16 %v1044, %v1043
      %v1060 = vpack.c.b16 %v1046, %v1045
      %v1061 = vpack.c.b16 %v1048, %v1047
      %v1062 = vpack.c.b16 %v1050, %v1049
      %v1063 = vpack.c.b16 %v1052, %v1051
      %v1064 = vpack.c.b16 %v1054, %v1053
      %v1065 = vpack.c.b16 %v1056, %v1055
      %v1066 = vpack.c.b16 %v1058, %v1057
      %1075 = vmatprep.subr.bf16.mxu0 0
      %1076 = vmatpush1.bf16.msra.mxu0 %v1066
      %1077 = vmatprep.subr.bf16.mxu0 0
      %1078 = vmatpush1.bf16.msra.mxu0 %v1065
      %1079 = vmatprep.subr.bf16.mxu0 0
      %1080 = vmatpush1.bf16.msra.mxu0 %v1064
      %1081 = vmatprep.subr.bf16.mxu0 0
      %1082 = vmatpush1.bf16.msra.mxu0 %v1063
      %1083 = vmatprep.subr.bf16.mxu0 0
      %1084 = vmatpush1.bf16.msra.mxu0 %v1062
      %1085 = vmatprep.subr.bf16.mxu0 0
      %1086 = vmatpush1.bf16.msra.mxu0 %v1061
      %1087 = vmatprep.subr.bf16.mxu0 0
      %1088 = vmatpush1.bf16.msra.mxu0 %v1060
      %1089 = vmatprep.subr.bf16.mxu0 0
      %1090 = vmatpush1.bf16.msra.mxu0 %v1059
      %1091 = vmatprep.subr.bf16.mxu0 0
      %1092 = vmatpush2.bf16.msra.mxu0 0
      %1093 = vmatprep.subr.bf16.mxu0 0
      %1094 = vmatpush2.bf16.msra.mxu0 0
      %1095 = vmatprep.subr.bf16.mxu0 0
      %1096 = vmatpush2.bf16.msra.mxu0 0
      %1097 = vmatprep.subr.bf16.mxu0 0
      %1098 = vmatpush2.bf16.msra.mxu0 0
      %1099 = vmatprep.subr.bf16.mxu0 0
      %1100 = vmatpush2.bf16.msra.mxu0 0
      %1101 = vmatprep.subr.bf16.mxu0 0
      %1102 = vmatpush2.bf16.msra.mxu0 0
      %1103 = vmatprep.subr.bf16.mxu0 0
      %1104 = vmatpush2.bf16.msra.mxu0 0
      %1105 = vmatprep.subr.bf16.mxu0 0
      %1106 = vmatpush2.bf16.msra.mxu0 0
      %1107 = vmatprep.mubr.bf16.mxu0 0
      %1108 = vmatmul.mubr.bf16.gmra.mxu0 %v972
      %v1109 = vpop.f32.mrf.mxu0
      %v1110 = vadd.f32 %v1025, %v1109
      %v1111 = vpop.f32.mrf.mxu0
      %v1112 = vpop.f32.mrf.mxu0
      %v1113 = vadd.f32 %v1025, %v1112
      %v1114 = vpop.f32.mrf.mxu0
      %1115 = vmatprep.mubr.bf16.mxu0 0
      %1116 = vmatmul.mubr.bf16.gmra.mxu0 %v973
      %v1117 = vpop.f32.mrf.mxu0
      %v1118 = vadd.f32 %v1025, %v1117
      %v1119 = vpop.f32.mrf.mxu0
      %v1120 = vpop.f32.mrf.mxu0
      %v1121 = vadd.f32 %v1025, %v1120
      %v1122 = vpop.f32.mrf.mxu0
      %1123 = vmatprep.mubr.bf16.mxu0 0
      %1124 = vmatmul.mubr.bf16.gmra.mxu0 %v974
      %v1125 = vpop.f32.mrf.mxu0
      %v1126 = vadd.f32 %v1025, %v1125
      %v1127 = vpop.f32.mrf.mxu0
      %v1128 = vpop.f32.mrf.mxu0
      %v1129 = vadd.f32 %v1025, %v1128
      %v1130 = vpop.f32.mrf.mxu0
      %1131 = vmatprep.mubr.bf16.mxu0 0
      %1132 = vmatmul.mubr.bf16.gmra.mxu0 %v975
      %v1133 = vpop.f32.mrf.mxu0
      %v1134 = vadd.f32 %v1025, %v1133
      %v1135 = vpop.f32.mrf.mxu0
      %v1136 = vpop.f32.mrf.mxu0
      %v1137 = vadd.f32 %v1025, %v1136
      %v1138 = vpop.f32.mrf.mxu0
      %1139 = vmatprep.mubr.bf16.mxu0 0
      %1140 = vmatmul.mubr.bf16.gmra.mxu0 %v976
      %v1141 = vpop.f32.mrf.mxu0
      %v1142 = vadd.f32 %v1025, %v1141
      %v1143 = vpop.f32.mrf.mxu0
      %v1144 = vpop.f32.mrf.mxu0
      %v1145 = vadd.f32 %v1025, %v1144
      %v1146 = vpop.f32.mrf.mxu0
      %1147 = vmatprep.mubr.bf16.mxu0 0
      %1148 = vmatmul.mubr.bf16.gmra.mxu0 %v977
      %v1149 = vpop.f32.mrf.mxu0
      %v1150 = vadd.f32 %v1025, %v1149
      %v1151 = vpop.f32.mrf.mxu0
      %v1152 = vpop.f32.mrf.mxu0
      %v1153 = vadd.f32 %v1025, %v1152
      %v1154 = vpop.f32.mrf.mxu0
      %1155 = vmatprep.mubr.bf16.mxu0 0
      %1156 = vmatmul.mubr.bf16.gmra.mxu0 %v978
      %v1157 = vpop.f32.mrf.mxu0
      %v1158 = vadd.f32 %v1025, %v1157
      %v1159 = vpop.f32.mrf.mxu0
      %v1160 = vpop.f32.mrf.mxu0
      %v1161 = vadd.f32 %v1025, %v1160
      %v1162 = vpop.f32.mrf.mxu0
      %1163 = vmatprep.mubr.bf16.mxu0 0
      %1164 = vmatmul.mubr.bf16.gmra.mxu0 %v979
      %v1165 = vpop.f32.mrf.mxu0
      %v1166 = vadd.f32 %v1025, %v1165
      %v1167 = vpop.f32.mrf.mxu0
      %v1168 = vpop.f32.mrf.mxu0
      %v1169 = vadd.f32 %v1025, %v1168
      %v1170 = vpop.f32.mrf.mxu0
      %1171 = vmatprep.mubr.bf16.mxu0 0
      %1172 = vmatmul.mubr.bf16.gmra.mxu0 %v980
      %v1173 = vpop.f32.mrf.mxu0
      %v1174 = vadd.f32 %v1025, %v1173
      %v1175 = vpop.f32.mrf.mxu0
      %v1176 = vpop.f32.mrf.mxu0
      %v1177 = vadd.f32 %v1025, %v1176
      %v1178 = vpop.f32.mrf.mxu0
      %1179 = vmatprep.mubr.bf16.mxu0 0
      %1180 = vmatmul.mubr.bf16.gmra.mxu0 %v981
      %v1181 = vpop.f32.mrf.mxu0
      %v1182 = vadd.f32 %v1025, %v1181
      %v1183 = vpop.f32.mrf.mxu0
      %v1184 = vpop.f32.mrf.mxu0
      %v1185 = vadd.f32 %v1025, %v1184
      %v1186 = vpop.f32.mrf.mxu0
      %1187 = vmatprep.mubr.bf16.mxu0 0
      %1188 = vmatmul.mubr.bf16.gmra.mxu0 %v982
      %v1189 = vpop.f32.mrf.mxu0
      %v1190 = vadd.f32 %v1025, %v1189
      %v1191 = vpop.f32.mrf.mxu0
      %v1192 = vpop.f32.mrf.mxu0
      %v1193 = vadd.f32 %v1025, %v1192
      %v1194 = vpop.f32.mrf.mxu0
      %1195 = vmatprep.mubr.bf16.mxu0 0
      %1196 = vmatmul.mubr.bf16.gmra.mxu0 %v983
      %v1197 = vpop.f32.mrf.mxu0
      %v1198 = vadd.f32 %v1025, %v1197
      %v1199 = vpop.f32.mrf.mxu0
      %v1200 = vpop.f32.mrf.mxu0
      %v1201 = vadd.f32 %v1025, %v1200
      %v1202 = vpop.f32.mrf.mxu0
      %1203 = vmatprep.mubr.bf16.mxu0 0
      %1204 = vmatmul.mubr.bf16.gmra.mxu0 %v984
      %v1205 = vpop.f32.mrf.mxu0
      %v1206 = vadd.f32 %v1025, %v1205
      %v1207 = vpop.f32.mrf.mxu0
      %v1208 = vpop.f32.mrf.mxu0
      %v1209 = vadd.f32 %v1025, %v1208
      %v1210 = vpop.f32.mrf.mxu0
      %1211 = vmatprep.mubr.bf16.mxu0 0
      %1212 = vmatmul.mubr.bf16.gmra.mxu0 %v985
      %v1213 = vpop.f32.mrf.mxu0
      %v1214 = vadd.f32 %v1025, %v1213
      %v1215 = vpop.f32.mrf.mxu0
      %v1216 = vpop.f32.mrf.mxu0
      %v1217 = vadd.f32 %v1025, %v1216
      %v1218 = vpop.f32.mrf.mxu0
      %1219 = vmatprep.mubr.bf16.mxu0 0
      %1220 = vmatmul.mubr.bf16.gmra.mxu0 %v986
      %v1221 = vpop.f32.mrf.mxu0
      %v1222 = vadd.f32 %v1025, %v1221
      %v1223 = vpop.f32.mrf.mxu0
      %v1224 = vpop.f32.mrf.mxu0
      %v1225 = vadd.f32 %v1025, %v1224
      %v1226 = vpop.f32.mrf.mxu0
      %1227 = vmatprep.mubr.bf16.mxu0 0
      %1228 = vmatmul.mubr.bf16.gmra.mxu0 %v987
      %v1229 = vpop.f32.mrf.mxu0
      %v1230 = vadd.f32 %v1025, %v1229
      %v1231 = vpop.f32.mrf.mxu0
      %v1232 = vpop.f32.mrf.mxu0
      %v1233 = vadd.f32 %v1025, %v1232
      %v1234 = vpop.f32.mrf.mxu0
      %1235 = vmatprep.mubr.bf16.mxu0 0
      %1236 = vmatmul.mubr.bf16.gmra.mxu0 %v988
      %v1237 = vpop.f32.mrf.mxu0
      %v1238 = vadd.f32 %v1025, %v1237
      %v1239 = vpop.f32.mrf.mxu0
      %v1240 = vpop.f32.mrf.mxu0
      %v1241 = vadd.f32 %v1025, %v1240
      %v1242 = vpop.f32.mrf.mxu0
      %1243 = vmatprep.mubr.bf16.mxu0 0
      %1244 = vmatmul.mubr.bf16.gmra.mxu0 %v989
      %v1245 = vpop.f32.mrf.mxu0
      %v1246 = vadd.f32 %v1025, %v1245
      %v1247 = vpop.f32.mrf.mxu0
      %v1248 = vpop.f32.mrf.mxu0
      %v1249 = vadd.f32 %v1025, %v1248
      %v1250 = vpop.f32.mrf.mxu0
      %1251 = vmatprep.mubr.bf16.mxu0 0
      %1252 = vmatmul.mubr.bf16.gmra.mxu0 %v990
      %v1253 = vpop.f32.mrf.mxu0
      %v1254 = vadd.f32 %v1025, %v1253
      %v1255 = vpop.f32.mrf.mxu0
      %v1256 = vpop.f32.mrf.mxu0
      %v1257 = vadd.f32 %v1025, %v1256
      %v1258 = vpop.f32.mrf.mxu0
      %1259 = vmatprep.mubr.bf16.mxu0 0
      %1260 = vmatmul.mubr.bf16.gmra.mxu0 %v991
      %v1261 = vpop.f32.mrf.mxu0
      %v1262 = vadd.f32 %v1025, %v1261
      %v1263 = vpop.f32.mrf.mxu0
      %v1264 = vpop.f32.mrf.mxu0
      %v1265 = vadd.f32 %v1025, %v1264
      %v1266 = vpop.f32.mrf.mxu0
      %1267 = vmatprep.mubr.bf16.mxu0 0
      %1268 = vmatmul.mubr.bf16.gmra.mxu0 %v992
      %v1269 = vpop.f32.mrf.mxu0
      %v1270 = vadd.f32 %v1025, %v1269
      %v1271 = vpop.f32.mrf.mxu0
      %v1272 = vpop.f32.mrf.mxu0
      %v1273 = vadd.f32 %v1025, %v1272
      %v1274 = vpop.f32.mrf.mxu0
      %1275 = vmatprep.mubr.bf16.mxu0 0
      %1276 = vmatmul.mubr.bf16.gmra.mxu0 %v993
      %v1277 = vpop.f32.mrf.mxu0
      %v1278 = vadd.f32 %v1025, %v1277
      %v1279 = vpop.f32.mrf.mxu0
      %v1280 = vpop.f32.mrf.mxu0
      %v1281 = vadd.f32 %v1025, %v1280
      %v1282 = vpop.f32.mrf.mxu0
      %1283 = vmatprep.mubr.bf16.mxu0 0
      %1284 = vmatmul.mubr.bf16.gmra.mxu0 %v994
      %v1285 = vpop.f32.mrf.mxu0
      %v1286 = vadd.f32 %v1025, %v1285
      %v1287 = vpop.f32.mrf.mxu0
      %v1288 = vpop.f32.mrf.mxu0
      %v1289 = vadd.f32 %v1025, %v1288
      %v1290 = vpop.f32.mrf.mxu0
      %1291 = vmatprep.mubr.bf16.mxu0 0
      %1292 = vmatmul.mubr.bf16.gmra.mxu0 %v995
      %v1293 = vpop.f32.mrf.mxu0
      %v1294 = vadd.f32 %v1025, %v1293
      %v1295 = vpop.f32.mrf.mxu0
      %v1296 = vpop.f32.mrf.mxu0
      %v1297 = vadd.f32 %v1025, %v1296
      %v1298 = vpop.f32.mrf.mxu0
      %1299 = vmatprep.mubr.bf16.mxu0 0
      %1300 = vmatmul.mubr.bf16.gmra.mxu0 %v996
      %v1301 = vpop.f32.mrf.mxu0
      %v1302 = vadd.f32 %v1025, %v1301
      %v1303 = vpop.f32.mrf.mxu0
      %v1304 = vpop.f32.mrf.mxu0
      %v1305 = vadd.f32 %v1025, %v1304
      %v1306 = vpop.f32.mrf.mxu0
      %1307 = vmatprep.mubr.bf16.mxu0 0
      %1308 = vmatmul.mubr.bf16.gmra.mxu0 %v997
      %v1309 = vpop.f32.mrf.mxu0
      %v1310 = vadd.f32 %v1025, %v1309
      %v1311 = vpop.f32.mrf.mxu0
      %v1312 = vpop.f32.mrf.mxu0
      %v1313 = vadd.f32 %v1025, %v1312
      %v1314 = vpop.f32.mrf.mxu0
      %1315 = vmatprep.mubr.bf16.mxu0 0
      %1316 = vmatmul.mubr.bf16.gmra.mxu0 %v998
      %v1317 = vpop.f32.mrf.mxu0
      %v1318 = vadd.f32 %v1025, %v1317
      %v1319 = vpop.f32.mrf.mxu0
      %v1320 = vpop.f32.mrf.mxu0
      %v1321 = vadd.f32 %v1025, %v1320
      %v1322 = vpop.f32.mrf.mxu0
      %1323 = vmatprep.mubr.bf16.mxu0 0
      %1324 = vmatmul.mubr.bf16.gmra.mxu0 %v999
      %v1325 = vpop.f32.mrf.mxu0
      %v1326 = vadd.f32 %v1025, %v1325
      %v1327 = vpop.f32.mrf.mxu0
      %v1328 = vpop.f32.mrf.mxu0
      %v1329 = vadd.f32 %v1025, %v1328
      %v1330 = vpop.f32.mrf.mxu0
      %1331 = vmatprep.mubr.bf16.mxu0 0
      %1332 = vmatmul.mubr.bf16.gmra.mxu0 %v1000
      %v1333 = vpop.f32.mrf.mxu0
      %v1334 = vadd.f32 %v1025, %v1333
      %v1335 = vpop.f32.mrf.mxu0
      %v1336 = vpop.f32.mrf.mxu0
      %v1337 = vadd.f32 %v1025, %v1336
      %v1338 = vpop.f32.mrf.mxu0
      %1339 = vmatprep.mubr.bf16.mxu0 0
      %1340 = vmatmul.mubr.bf16.gmra.mxu0 %v1001
      %v1341 = vpop.f32.mrf.mxu0
      %v1342 = vadd.f32 %v1025, %v1341
      %v1343 = vpop.f32.mrf.mxu0
      %v1344 = vpop.f32.mrf.mxu0
      %v1345 = vadd.f32 %v1025, %v1344
      %v1346 = vpop.f32.mrf.mxu0
      %1347 = vmatprep.mubr.bf16.mxu0 0
      %1348 = vmatmul.mubr.bf16.gmra.mxu0 %v1002
      %v1349 = vpop.f32.mrf.mxu0
      %v1350 = vadd.f32 %v1025, %v1349
      %v1351 = vpop.f32.mrf.mxu0
      %v1352 = vpop.f32.mrf.mxu0
      %v1353 = vadd.f32 %v1025, %v1352
      %v1354 = vpop.f32.mrf.mxu0
      %1355 = vmatprep.mubr.bf16.mxu0 0
      %1356 = vmatmul.mubr.bf16.gmra.mxu0 %v1003
      %v1357 = vpop.f32.mrf.mxu0
      %v1358 = vadd.f32 %v1025, %v1357
      %v1359 = vpop.f32.mrf.mxu0
      %v1360 = vpop.f32.mrf.mxu0
      %v1361 = vadd.f32 %v1025, %v1360
      %v1362 = vpop.f32.mrf.mxu0
      %1363 = vdwg.mxu0
      %v1364 = vtanh.pop %v1110
      %v1365 = vtanh.pop %v1113
      %v1366 = vtanh.pop %v1118
      %v1367 = vtanh.pop %v1121
      %v1368 = vtanh.pop %v1126
      %v1369 = vtanh.pop %v1129
      %v1370 = vtanh.pop %v1134
      %v1371 = vtanh.pop %v1137
      %v1372 = vtanh.pop %v1142
      %v1373 = vtanh.pop %v1145
      %v1374 = vtanh.pop %v1150
      %v1375 = vtanh.pop %v1153
      %v1376 = vtanh.pop %v1158
      %v1377 = vtanh.pop %v1161
      %v1378 = vtanh.pop %v1166
      %v1379 = vtanh.pop %v1169
      %v1380 = vtanh.pop %v1174
      %v1381 = vtanh.pop %v1177
      %v1382 = vtanh.pop %v1182
      %v1383 = vtanh.pop %v1185
      %v1384 = vtanh.pop %v1190
      %v1385 = vtanh.pop %v1193
      %v1386 = vtanh.pop %v1198
      %v1387 = vtanh.pop %v1201
      %v1388 = vtanh.pop %v1206
      %v1389 = vtanh.pop %v1209
      %v1390 = vtanh.pop %v1214
      %v1391 = vtanh.pop %v1217
      %v1392 = vtanh.pop %v1222
      %v1393 = vtanh.pop %v1225
      %v1394 = vtanh.pop %v1230
      %v1395 = vtanh.pop %v1233
      %v1396 = vtanh.pop %v1238
      %v1397 = vtanh.pop %v1241
      %v1398 = vtanh.pop %v1246
      %v1399 = vtanh.pop %v1249
      %v1400 = vtanh.pop %v1254
      %v1401 = vtanh.pop %v1257
      %v1402 = vtanh.pop %v1262
      %v1403 = vtanh.pop %v1265
      %v1404 = vtanh.pop %v1270
      %v1405 = vtanh.pop %v1273
      %v1406 = vtanh.pop %v1278
      %v1407 = vtanh.pop %v1281
      %v1408 = vtanh.pop %v1286
      %v1409 = vtanh.pop %v1289
      %v1410 = vtanh.pop %v1294
      %v1411 = vtanh.pop %v1297
      %v1412 = vtanh.pop %v1302
      %v1413 = vtanh.pop %v1305
      %v1414 = vtanh.pop %v1310
      %v1415 = vtanh.pop %v1313
      %v1416 = vtanh.pop %v1318
      %v1417 = vtanh.pop %v1321
      %v1418 = vtanh.pop %v1326
      %v1419 = vtanh.pop %v1329
      %v1420 = vtanh.pop %v1334
      %v1421 = vtanh.pop %v1337
      %v1422 = vtanh.pop %v1342
      %v1423 = vtanh.pop %v1345
      %v1424 = vtanh.pop %v1350
      %v1425 = vtanh.pop %v1353
      %v1426 = vtanh.pop %v1358
      %v1427 = vtanh.pop %v1361
      %v1428 = vpack.c.bf16 %v1365, %v1364
      %v1429 = vpack.c.bf16 %v1367, %v1366
      %v1430 = vpack.c.bf16 %v1369, %v1368
      %v1431 = vpack.c.bf16 %v1371, %v1370
      %v1432 = vpack.c.bf16 %v1373, %v1372
      %v1433 = vpack.c.bf16 %v1375, %v1374
      %v1434 = vpack.c.bf16 %v1377, %v1376
      %v1435 = vpack.c.bf16 %v1379, %v1378
      %v1436 = vpack.c.bf16 %v1381, %v1380
      %v1437 = vpack.c.bf16 %v1383, %v1382
      %v1438 = vpack.c.bf16 %v1385, %v1384
      %v1439 = vpack.c.bf16 %v1387, %v1386
      %v1440 = vpack.c.bf16 %v1389, %v1388
      %v1441 = vpack.c.bf16 %v1391, %v1390
      %v1442 = vpack.c.bf16 %v1393, %v1392
      %v1443 = vpack.c.bf16 %v1395, %v1394
      %v1444 = vpack.c.bf16 %v1397, %v1396
      %v1445 = vpack.c.bf16 %v1399, %v1398
      %v1446 = vpack.c.bf16 %v1401, %v1400
      %v1447 = vpack.c.bf16 %v1403, %v1402
      %v1448 = vpack.c.bf16 %v1405, %v1404
      %v1449 = vpack.c.bf16 %v1407, %v1406
      %v1450 = vpack.c.bf16 %v1409, %v1408
      %v1451 = vpack.c.bf16 %v1411, %v1410
      %v1452 = vpack.c.bf16 %v1413, %v1412
      %v1453 = vpack.c.bf16 %v1415, %v1414
      %v1454 = vpack.c.bf16 %v1417, %v1416
      %v1455 = vpack.c.bf16 %v1419, %v1418
      %v1456 = vpack.c.bf16 %v1421, %v1420
      %v1457 = vpack.c.bf16 %v1423, %v1422
      %v1458 = vpack.c.bf16 %v1425, %v1424
      %v1459 = vpack.c.bf16 %v1427, %v1426
      %v1460 = vld [vmem:[%s5] sm:$0xf]
      %v1461 = vld [vmem:[%s5 + $0x4] sm:$0xf]
      %v1462 = vld [vmem:[%s5 + $0x8] sm:$0xf]
      %v1463 = vld [vmem:[%s5 + $0xc] sm:$0xf]
      %v1464 = vld [vmem:[%s5 + $0x10] sm:$0xf]
      %v1465 = vld [vmem:[%s5 + $0x14] sm:$0xf]
      %v1466 = vld [vmem:[%s5 + $0x18] sm:$0xf]
      %v1467 = vld [vmem:[%s5 + $0x1c] sm:$0xf]
      %v1468 = vld [vmem:[%s5 + $0x20] sm:$0xf]
      %v1469 = vld [vmem:[%s5 + $0x24] sm:$0xf]
      %v1470 = vld [vmem:[%s5 + $0x28] sm:$0xf]
      %v1471 = vld [vmem:[%s5 + $0x2c] sm:$0xf]
      %v1472 = vld [vmem:[%s5 + $0x30] sm:$0xf]
      %v1473 = vld [vmem:[%s5 + $0x34] sm:$0xf]
      %v1474 = vld [vmem:[%s5 + $0x38] sm:$0xf]
      %v1475 = vld [vmem:[%s5 + $0x3c] sm:$0xf]
      %v1476 = vld [vmem:[%s6] sm:$0x1]
      %v1478 = vlaneseq
      %v1479 = vshrl.u32 %v1478, 7
      %v1480 = vsub.s32 0, %v1479
      %v1481 = vrot.slane %v1476, %v1480
      %v1499 = vunpack.c.l.b16 %v1460
      %v1500 = vunpack.c.l.b16 %v1461
      %v1501 = vunpack.c.l.b16 %v1462
      %v1502 = vunpack.c.l.b16 %v1463
      %v1503 = vunpack.c.l.b16 %v1464
      %v1504 = vunpack.c.l.b16 %v1465
      %v1505 = vunpack.c.l.b16 %v1466
      %v1506 = vunpack.c.l.b16 %v1467
      %v1507 = vunpack.c.l.b16 %v1468
      %v1508 = vunpack.c.l.b16 %v1469
      %v1509 = vunpack.c.l.b16 %v1470
      %v1510 = vunpack.c.l.b16 %v1471
      %v1511 = vunpack.c.l.b16 %v1472
      %v1512 = vunpack.c.l.b16 %v1473
      %v1513 = vunpack.c.l.b16 %v1474
      %v1514 = vunpack.c.l.b16 %v1475
      %v1515 = vpack.c.b16 %v1500, %v1499
      %v1516 = vpack.c.b16 %v1502, %v1501
      %v1517 = vpack.c.b16 %v1504, %v1503
      %v1518 = vpack.c.b16 %v1506, %v1505
      %v1519 = vpack.c.b16 %v1508, %v1507
      %v1520 = vpack.c.b16 %v1510, %v1509
      %v1521 = vpack.c.b16 %v1512, %v1511
      %v1522 = vpack.c.b16 %v1514, %v1513
      %1531 = vmatprep.subr.bf16.mxu0 0
      %1532 = vmatpush1.bf16.msra.mxu0 %v1522
      %1533 = vmatprep.subr.bf16.mxu0 0
      %1534 = vmatpush1.bf16.msra.mxu0 %v1521
      %1535 = vmatprep.subr.bf16.mxu0 0
      %1536 = vmatpush1.bf16.msra.mxu0 %v1520
      %1537 = vmatprep.subr.bf16.mxu0 0
      %1538 = vmatpush1.bf16.msra.mxu0 %v1519
      %1539 = vmatprep.subr.bf16.mxu0 0
      %1540 = vmatpush1.bf16.msra.mxu0 %v1518
      %1541 = vmatprep.subr.bf16.mxu0 0
      %1542 = vmatpush1.bf16.msra.mxu0 %v1517
      %1543 = vmatprep.subr.bf16.mxu0 0
      %1544 = vmatpush1.bf16.msra.mxu0 %v1516
      %1545 = vmatprep.subr.bf16.mxu0 0
      %1546 = vmatpush1.bf16.msra.mxu0 %v1515
      %1547 = vmatprep.subr.bf16.mxu0 0
      %1548 = vmatpush2.bf16.msra.mxu0 0
      %1549 = vmatprep.subr.bf16.mxu0 0
      %1550 = vmatpush2.bf16.msra.mxu0 0
      %1551 = vmatprep.subr.bf16.mxu0 0
      %1552 = vmatpush2.bf16.msra.mxu0 0
      %1553 = vmatprep.subr.bf16.mxu0 0
      %1554 = vmatpush2.bf16.msra.mxu0 0
      %1555 = vmatprep.subr.bf16.mxu0 0
      %1556 = vmatpush2.bf16.msra.mxu0 0
      %1557 = vmatprep.subr.bf16.mxu0 0
      %1558 = vmatpush2.bf16.msra.mxu0 0
      %1559 = vmatprep.subr.bf16.mxu0 0
      %1560 = vmatpush2.bf16.msra.mxu0 0
      %1561 = vmatprep.subr.bf16.mxu0 0
      %1562 = vmatpush2.bf16.msra.mxu0 0
      %1563 = vmatprep.mubr.bf16.mxu0 0
      %1564 = vmatmul.mubr.bf16.gmra.mxu0 %v1428
      %v1565 = vpop.f32.mrf.mxu0
      %v1566 = vadd.f32 %v1481, %v1565
      %v1567 = vpop.f32.mrf.mxu0
      %v1568 = vpop.f32.mrf.mxu0
      %v1569 = vadd.f32 %v1481, %v1568
      %v1570 = vpop.f32.mrf.mxu0
      %1571 = vmatprep.mubr.bf16.mxu0 0
      %1572 = vmatmul.mubr.bf16.gmra.mxu0 %v1429
      %v1573 = vpop.f32.mrf.mxu0
      %v1574 = vadd.f32 %v1481, %v1573
      %v1575 = vpop.f32.mrf.mxu0
      %v1576 = vpop.f32.mrf.mxu0
      %v1577 = vadd.f32 %v1481, %v1576
      %v1578 = vpop.f32.mrf.mxu0
      %1579 = vmatprep.mubr.bf16.mxu0 0
      %1580 = vmatmul.mubr.bf16.gmra.mxu0 %v1430
      %v1581 = vpop.f32.mrf.mxu0
      %v1582 = vadd.f32 %v1481, %v1581
      %v1583 = vpop.f32.mrf.mxu0
      %v1584 = vpop.f32.mrf.mxu0
      %v1585 = vadd.f32 %v1481, %v1584
      %v1586 = vpop.f32.mrf.mxu0
      %1587 = vmatprep.mubr.bf16.mxu0 0
      %1588 = vmatmul.mubr.bf16.gmra.mxu0 %v1431
      %v1589 = vpop.f32.mrf.mxu0
      %v1590 = vadd.f32 %v1481, %v1589
      %v1591 = vpop.f32.mrf.mxu0
      %v1592 = vpop.f32.mrf.mxu0
      %v1593 = vadd.f32 %v1481, %v1592
      %v1594 = vpop.f32.mrf.mxu0
      %1595 = vmatprep.mubr.bf16.mxu0 0
      %1596 = vmatmul.mubr.bf16.gmra.mxu0 %v1432
      %v1597 = vpop.f32.mrf.mxu0
      %v1598 = vadd.f32 %v1481, %v1597
      %v1599 = vpop.f32.mrf.mxu0
      %v1600 = vpop.f32.mrf.mxu0
      %v1601 = vadd.f32 %v1481, %v1600
      %v1602 = vpop.f32.mrf.mxu0
      %1603 = vmatprep.mubr.bf16.mxu0 0
      %1604 = vmatmul.mubr.bf16.gmra.mxu0 %v1433
      %v1605 = vpop.f32.mrf.mxu0
      %v1606 = vadd.f32 %v1481, %v1605
      %v1607 = vpop.f32.mrf.mxu0
      %v1608 = vpop.f32.mrf.mxu0
      %v1609 = vadd.f32 %v1481, %v1608
      %v1610 = vpop.f32.mrf.mxu0
      %1611 = vmatprep.mubr.bf16.mxu0 0
      %1612 = vmatmul.mubr.bf16.gmra.mxu0 %v1434
      %v1613 = vpop.f32.mrf.mxu0
      %v1614 = vadd.f32 %v1481, %v1613
      %v1615 = vpop.f32.mrf.mxu0
      %v1616 = vpop.f32.mrf.mxu0
      %v1617 = vadd.f32 %v1481, %v1616
      %v1618 = vpop.f32.mrf.mxu0
      %1619 = vmatprep.mubr.bf16.mxu0 0
      %1620 = vmatmul.mubr.bf16.gmra.mxu0 %v1435
      %v1621 = vpop.f32.mrf.mxu0
      %v1622 = vadd.f32 %v1481, %v1621
      %v1623 = vpop.f32.mrf.mxu0
      %v1624 = vpop.f32.mrf.mxu0
      %v1625 = vadd.f32 %v1481, %v1624
      %v1626 = vpop.f32.mrf.mxu0
      %1627 = vmatprep.mubr.bf16.mxu0 0
      %1628 = vmatmul.mubr.bf16.gmra.mxu0 %v1436
      %v1629 = vpop.f32.mrf.mxu0
      %v1630 = vadd.f32 %v1481, %v1629
      %v1631 = vpop.f32.mrf.mxu0
      %v1632 = vpop.f32.mrf.mxu0
      %v1633 = vadd.f32 %v1481, %v1632
      %v1634 = vpop.f32.mrf.mxu0
      %1635 = vmatprep.mubr.bf16.mxu0 0
      %1636 = vmatmul.mubr.bf16.gmra.mxu0 %v1437
      %v1637 = vpop.f32.mrf.mxu0
      %v1638 = vadd.f32 %v1481, %v1637
      %v1639 = vpop.f32.mrf.mxu0
      %v1640 = vpop.f32.mrf.mxu0
      %v1641 = vadd.f32 %v1481, %v1640
      %v1642 = vpop.f32.mrf.mxu0
      %1643 = vmatprep.mubr.bf16.mxu0 0
      %1644 = vmatmul.mubr.bf16.gmra.mxu0 %v1438
      %v1645 = vpop.f32.mrf.mxu0
      %v1646 = vadd.f32 %v1481, %v1645
      %v1647 = vpop.f32.mrf.mxu0
      %v1648 = vpop.f32.mrf.mxu0
      %v1649 = vadd.f32 %v1481, %v1648
      %v1650 = vpop.f32.mrf.mxu0
      %1651 = vmatprep.mubr.bf16.mxu0 0
      %1652 = vmatmul.mubr.bf16.gmra.mxu0 %v1439
      %v1653 = vpop.f32.mrf.mxu0
      %v1654 = vadd.f32 %v1481, %v1653
      %v1655 = vpop.f32.mrf.mxu0
      %v1656 = vpop.f32.mrf.mxu0
      %v1657 = vadd.f32 %v1481, %v1656
      %v1658 = vpop.f32.mrf.mxu0
      %1659 = vmatprep.mubr.bf16.mxu0 0
      %1660 = vmatmul.mubr.bf16.gmra.mxu0 %v1440
      %v1661 = vpop.f32.mrf.mxu0
      %v1662 = vadd.f32 %v1481, %v1661
      %v1663 = vpop.f32.mrf.mxu0
      %v1664 = vpop.f32.mrf.mxu0
      %v1665 = vadd.f32 %v1481, %v1664
      %v1666 = vpop.f32.mrf.mxu0
      %1667 = vmatprep.mubr.bf16.mxu0 0
      %1668 = vmatmul.mubr.bf16.gmra.mxu0 %v1441
      %v1669 = vpop.f32.mrf.mxu0
      %v1670 = vadd.f32 %v1481, %v1669
      %v1671 = vpop.f32.mrf.mxu0
      %v1672 = vpop.f32.mrf.mxu0
      %v1673 = vadd.f32 %v1481, %v1672
      %v1674 = vpop.f32.mrf.mxu0
      %1675 = vmatprep.mubr.bf16.mxu0 0
      %1676 = vmatmul.mubr.bf16.gmra.mxu0 %v1442
      %v1677 = vpop.f32.mrf.mxu0
      %v1678 = vadd.f32 %v1481, %v1677
      %v1679 = vpop.f32.mrf.mxu0
      %v1680 = vpop.f32.mrf.mxu0
      %v1681 = vadd.f32 %v1481, %v1680
      %v1682 = vpop.f32.mrf.mxu0
      %1683 = vmatprep.mubr.bf16.mxu0 0
      %1684 = vmatmul.mubr.bf16.gmra.mxu0 %v1443
      %v1685 = vpop.f32.mrf.mxu0
      %v1686 = vadd.f32 %v1481, %v1685
      %v1687 = vpop.f32.mrf.mxu0
      %v1688 = vpop.f32.mrf.mxu0
      %v1689 = vadd.f32 %v1481, %v1688
      %v1690 = vpop.f32.mrf.mxu0
      %1691 = vmatprep.mubr.bf16.mxu0 0
      %1692 = vmatmul.mubr.bf16.gmra.mxu0 %v1444
      %v1693 = vpop.f32.mrf.mxu0
      %v1694 = vadd.f32 %v1481, %v1693
      %v1695 = vpop.f32.mrf.mxu0
      %v1696 = vpop.f32.mrf.mxu0
      %v1697 = vadd.f32 %v1481, %v1696
      %v1698 = vpop.f32.mrf.mxu0
      %1699 = vmatprep.mubr.bf16.mxu0 0
      %1700 = vmatmul.mubr.bf16.gmra.mxu0 %v1445
      %v1701 = vpop.f32.mrf.mxu0
      %v1702 = vadd.f32 %v1481, %v1701
      %v1703 = vpop.f32.mrf.mxu0
      %v1704 = vpop.f32.mrf.mxu0
      %v1705 = vadd.f32 %v1481, %v1704
      %v1706 = vpop.f32.mrf.mxu0
      %1707 = vmatprep.mubr.bf16.mxu0 0
      %1708 = vmatmul.mubr.bf16.gmra.mxu0 %v1446
      %v1709 = vpop.f32.mrf.mxu0
      %v1710 = vadd.f32 %v1481, %v1709
      %v1711 = vpop.f32.mrf.mxu0
      %v1712 = vpop.f32.mrf.mxu0
      %v1713 = vadd.f32 %v1481, %v1712
      %v1714 = vpop.f32.mrf.mxu0
      %1715 = vmatprep.mubr.bf16.mxu0 0
      %1716 = vmatmul.mubr.bf16.gmra.mxu0 %v1447
      %v1717 = vpop.f32.mrf.mxu0
      %v1718 = vadd.f32 %v1481, %v1717
      %v1719 = vpop.f32.mrf.mxu0
      %v1720 = vpop.f32.mrf.mxu0
      %v1721 = vadd.f32 %v1481, %v1720
      %v1722 = vpop.f32.mrf.mxu0
      %1723 = vmatprep.mubr.bf16.mxu0 0
      %1724 = vmatmul.mubr.bf16.gmra.mxu0 %v1448
      %v1725 = vpop.f32.mrf.mxu0
      %v1726 = vadd.f32 %v1481, %v1725
      %v1727 = vpop.f32.mrf.mxu0
      %v1728 = vpop.f32.mrf.mxu0
      %v1729 = vadd.f32 %v1481, %v1728
      %v1730 = vpop.f32.mrf.mxu0
      %1731 = vmatprep.mubr.bf16.mxu0 0
      %1732 = vmatmul.mubr.bf16.gmra.mxu0 %v1449
      %v1733 = vpop.f32.mrf.mxu0
      %v1734 = vadd.f32 %v1481, %v1733
      %v1735 = vpop.f32.mrf.mxu0
      %v1736 = vpop.f32.mrf.mxu0
      %v1737 = vadd.f32 %v1481, %v1736
      %v1738 = vpop.f32.mrf.mxu0
      %1739 = vmatprep.mubr.bf16.mxu0 0
      %1740 = vmatmul.mubr.bf16.gmra.mxu0 %v1450
      %v1741 = vpop.f32.mrf.mxu0
      %v1742 = vadd.f32 %v1481, %v1741
      %v1743 = vpop.f32.mrf.mxu0
      %v1744 = vpop.f32.mrf.mxu0
      %v1745 = vadd.f32 %v1481, %v1744
      %v1746 = vpop.f32.mrf.mxu0
      %1747 = vmatprep.mubr.bf16.mxu0 0
      %1748 = vmatmul.mubr.bf16.gmra.mxu0 %v1451
      %v1749 = vpop.f32.mrf.mxu0
      %v1750 = vadd.f32 %v1481, %v1749
      %v1751 = vpop.f32.mrf.mxu0
      %v1752 = vpop.f32.mrf.mxu0
      %v1753 = vadd.f32 %v1481, %v1752
      %v1754 = vpop.f32.mrf.mxu0
      %1755 = vmatprep.mubr.bf16.mxu0 0
      %1756 = vmatmul.mubr.bf16.gmra.mxu0 %v1452
      %v1757 = vpop.f32.mrf.mxu0
      %v1758 = vadd.f32 %v1481, %v1757
      %v1759 = vpop.f32.mrf.mxu0
      %v1760 = vpop.f32.mrf.mxu0
      %v1761 = vadd.f32 %v1481, %v1760
      %v1762 = vpop.f32.mrf.mxu0
      %1763 = vmatprep.mubr.bf16.mxu0 0
      %1764 = vmatmul.mubr.bf16.gmra.mxu0 %v1453
      %v1765 = vpop.f32.mrf.mxu0
      %v1766 = vadd.f32 %v1481, %v1765
      %v1767 = vpop.f32.mrf.mxu0
      %v1768 = vpop.f32.mrf.mxu0
      %v1769 = vadd.f32 %v1481, %v1768
      %v1770 = vpop.f32.mrf.mxu0
      %1771 = vmatprep.mubr.bf16.mxu0 0
      %1772 = vmatmul.mubr.bf16.gmra.mxu0 %v1454
      %v1773 = vpop.f32.mrf.mxu0
      %v1774 = vadd.f32 %v1481, %v1773
      %v1775 = vpop.f32.mrf.mxu0
      %v1776 = vpop.f32.mrf.mxu0
      %v1777 = vadd.f32 %v1481, %v1776
      %v1778 = vpop.f32.mrf.mxu0
      %1779 = vmatprep.mubr.bf16.mxu0 0
      %1780 = vmatmul.mubr.bf16.gmra.mxu0 %v1455
      %v1781 = vpop.f32.mrf.mxu0
      %v1782 = vadd.f32 %v1481, %v1781
      %v1783 = vpop.f32.mrf.mxu0
      %v1784 = vpop.f32.mrf.mxu0
      %v1785 = vadd.f32 %v1481, %v1784
      %v1786 = vpop.f32.mrf.mxu0
      %1787 = vmatprep.mubr.bf16.mxu0 0
      %1788 = vmatmul.mubr.bf16.gmra.mxu0 %v1456
      %v1789 = vpop.f32.mrf.mxu0
      %v1790 = vadd.f32 %v1481, %v1789
      %v1791 = vpop.f32.mrf.mxu0
      %v1792 = vpop.f32.mrf.mxu0
      %v1793 = vadd.f32 %v1481, %v1792
      %v1794 = vpop.f32.mrf.mxu0
      %1795 = vmatprep.mubr.bf16.mxu0 0
      %1796 = vmatmul.mubr.bf16.gmra.mxu0 %v1457
      %v1797 = vpop.f32.mrf.mxu0
      %v1798 = vadd.f32 %v1481, %v1797
      %v1799 = vpop.f32.mrf.mxu0
      %v1800 = vpop.f32.mrf.mxu0
      %v1801 = vadd.f32 %v1481, %v1800
      %v1802 = vpop.f32.mrf.mxu0
      %1803 = vmatprep.mubr.bf16.mxu0 0
      %1804 = vmatmul.mubr.bf16.gmra.mxu0 %v1458
      %v1805 = vpop.f32.mrf.mxu0
      %v1806 = vadd.f32 %v1481, %v1805
      %v1807 = vpop.f32.mrf.mxu0
      %v1808 = vpop.f32.mrf.mxu0
      %v1809 = vadd.f32 %v1481, %v1808
      %v1810 = vpop.f32.mrf.mxu0
      %1811 = vmatprep.mubr.bf16.mxu0 0
      %1812 = vmatmul.mubr.bf16.gmra.mxu0 %v1459
      %v1813 = vpop.f32.mrf.mxu0
      %v1814 = vadd.f32 %v1481, %v1813
      %v1815 = vpop.f32.mrf.mxu0
      %v1816 = vpop.f32.mrf.mxu0
      %v1817 = vadd.f32 %v1481, %v1816
      %v1818 = vpop.f32.mrf.mxu0
      %1819 = vdwg.mxu0
      %1820 = vst.msk [vmem:[%s280] sm:$0xff] %vm522, %v1566
      %1821 = vst.msk [vmem:[%s280 + $0x8] sm:$0xff] %vm522, %v1569
      %1822 = vst.msk [vmem:[%s280 + $0x10] sm:$0xff] %vm522, %v1574
      %1823 = vst.msk [vmem:[%s280 + $0x18] sm:$0xff] %vm522, %v1577
      %1824 = vst.msk [vmem:[%s280 + $0x20] sm:$0xff] %vm522, %v1582
      %1825 = vst.msk [vmem:[%s280 + $0x28] sm:$0xff] %vm522, %v1585
      %1826 = vst.msk [vmem:[%s280 + $0x30] sm:$0xff] %vm522, %v1590
      %1827 = vst.msk [vmem:[%s280 + $0x38] sm:$0xff] %vm522, %v1593
      %1828 = vst.msk [vmem:[%s280 + $0x40] sm:$0xff] %vm522, %v1598
      %1829 = vst.msk [vmem:[%s280 + $0x48] sm:$0xff] %vm522, %v1601
      %1830 = vst.msk [vmem:[%s280 + $0x50] sm:$0xff] %vm522, %v1606
      %1831 = vst.msk [vmem:[%s280 + $0x58] sm:$0xff] %vm522, %v1609
      %1832 = vst.msk [vmem:[%s280 + $0x60] sm:$0xff] %vm522, %v1614
      %1833 = vst.msk [vmem:[%s280 + $0x68] sm:$0xff] %vm522, %v1617
      %1834 = vst.msk [vmem:[%s280 + $0x70] sm:$0xff] %vm522, %v1622
      %1835 = vst.msk [vmem:[%s280 + $0x78] sm:$0xff] %vm522, %v1625
      %1836 = vst.msk [vmem:[%s280 + $0x80] sm:$0xff] %vm522, %v1630
      %1837 = vst.msk [vmem:[%s280 + $0x88] sm:$0xff] %vm522, %v1633
      %1838 = vst.msk [vmem:[%s280 + $0x90] sm:$0xff] %vm522, %v1638
      %1839 = vst.msk [vmem:[%s280 + $0x98] sm:$0xff] %vm522, %v1641
      %1840 = vst.msk [vmem:[%s280 + $0xa0] sm:$0xff] %vm522, %v1646
      %1841 = vst.msk [vmem:[%s280 + $0xa8] sm:$0xff] %vm522, %v1649
      %1842 = vst.msk [vmem:[%s280 + $0xb0] sm:$0xff] %vm522, %v1654
      %1843 = vst.msk [vmem:[%s280 + $0xb8] sm:$0xff] %vm522, %v1657
      %1844 = vst.msk [vmem:[%s280 + $0xc0] sm:$0xff] %vm522, %v1662
      %1845 = vst.msk [vmem:[%s280 + $0xc8] sm:$0xff] %vm522, %v1665
      %1846 = vst.msk [vmem:[%s280 + $0xd0] sm:$0xff] %vm522, %v1670
      %1847 = vst.msk [vmem:[%s280 + $0xd8] sm:$0xff] %vm522, %v1673
      %1848 = vst.msk [vmem:[%s280 + $0xe0] sm:$0xff] %vm522, %v1678
      %1849 = vst.msk [vmem:[%s280 + $0xe8] sm:$0xff] %vm522, %v1681
      %1850 = vst.msk [vmem:[%s280 + $0xf0] sm:$0xff] %vm522, %v1686
      %1851 = vst.msk [vmem:[%s280 + $0xf8] sm:$0xff] %vm522, %v1689
      %1852 = vst.msk [vmem:[%s280 + $0x100] sm:$0xff] %vm522, %v1694
      %1853 = vst.msk [vmem:[%s280 + $0x108] sm:$0xff] %vm522, %v1697
      %1854 = vst.msk [vmem:[%s280 + $0x110] sm:$0xff] %vm522, %v1702
      %1855 = vst.msk [vmem:[%s280 + $0x118] sm:$0xff] %vm522, %v1705
      %1856 = vst.msk [vmem:[%s280 + $0x120] sm:$0xff] %vm522, %v1710
      %1857 = vst.msk [vmem:[%s280 + $0x128] sm:$0xff] %vm522, %v1713
      %1858 = vst.msk [vmem:[%s280 + $0x130] sm:$0xff] %vm522, %v1718
      %1859 = vst.msk [vmem:[%s280 + $0x138] sm:$0xff] %vm522, %v1721
      %1860 = vst.msk [vmem:[%s280 + $0x140] sm:$0xff] %vm522, %v1726
      %1861 = vst.msk [vmem:[%s280 + $0x148] sm:$0xff] %vm522, %v1729
      %1862 = vst.msk [vmem:[%s280 + $0x150] sm:$0xff] %vm522, %v1734
      %1863 = vst.msk [vmem:[%s280 + $0x158] sm:$0xff] %vm522, %v1737
      %1864 = vst.msk [vmem:[%s280 + $0x160] sm:$0xff] %vm522, %v1742
      %1865 = vst.msk [vmem:[%s280 + $0x168] sm:$0xff] %vm522, %v1745
      %1866 = vst.msk [vmem:[%s280 + $0x170] sm:$0xff] %vm522, %v1750
      %1867 = vst.msk [vmem:[%s280 + $0x178] sm:$0xff] %vm522, %v1753
      %1868 = vst.msk [vmem:[%s280 + $0x180] sm:$0xff] %vm522, %v1758
      %1869 = vst.msk [vmem:[%s280 + $0x188] sm:$0xff] %vm522, %v1761
      %1870 = vst.msk [vmem:[%s280 + $0x190] sm:$0xff] %vm522, %v1766
      %1871 = vst.msk [vmem:[%s280 + $0x198] sm:$0xff] %vm522, %v1769
      %1872 = vst.msk [vmem:[%s280 + $0x1a0] sm:$0xff] %vm522, %v1774
      %1873 = vst.msk [vmem:[%s280 + $0x1a8] sm:$0xff] %vm522, %v1777
      %1874 = vst.msk [vmem:[%s280 + $0x1b0] sm:$0xff] %vm522, %v1782
      %1875 = vst.msk [vmem:[%s280 + $0x1b8] sm:$0xff] %vm522, %v1785
      %1876 = vst.msk [vmem:[%s280 + $0x1c0] sm:$0xff] %vm522, %v1790
      %1877 = vst.msk [vmem:[%s280 + $0x1c8] sm:$0xff] %vm522, %v1793
      %1878 = vst.msk [vmem:[%s280 + $0x1d0] sm:$0xff] %vm522, %v1798
      %1879 = vst.msk [vmem:[%s280 + $0x1d8] sm:$0xff] %vm522, %v1801
      %1880 = vst.msk [vmem:[%s280 + $0x1e0] sm:$0xff] %vm522, %v1806
      %1881 = vst.msk [vmem:[%s280 + $0x1e8] sm:$0xff] %vm522, %v1809
      %1882 = vst.msk [vmem:[%s280 + $0x1f0] sm:$0xff] %vm522, %v1814
      %1883 = vst.msk [vmem:[%s280 + $0x1f8] sm:$0xff] %vm522, %v1817
      %s1884 = smul.u32 64, %s18
      %p1885 = scmp.lt.s32.totalorder %s1884, 127
      %s1886 = scalar_select %p1885, %s1884, 127
      %s1887 = smul.addr %s1886, 8
      %s1888 = scalar_lea.vmem %s7, %s1887
      // Predicated region
      $region49: #{mlp_complex_forward.1} parent=47 // pred_check
        %p1889 = pneg %p188
      $region50: #{mlp_complex_forward.1} parent=47 // pred_check_branch
        %1891 = sbr.rel (%p1889) target = $region52
      $region51: #{mlp_complex_forward.1} parent=47 // pred_region
        %s1892 = smul.u32 64, %s18
      $region52: #{mlp_complex_forward.1} parent=47 // pred_fallthru
        _
    $region48: #{mlp_complex_forward.1} parent=5 // pred_fallthru
      _
    %p1893 = scmp.le.s32.totalorder 2, %s13
    // Predicated region
    $region53: #{mlp_complex_forward.1} parent=5 // pred_check
      %p1894 = pneg %p1893
    $region54: #{mlp_complex_forward.1} parent=5 // pred_check_branch
      %1896 = sbr.rel (%p1894) target = $region56
    $region55: #{mlp_complex_forward.1} parent=5 // pred_region
      %s1897 = ssub.s32 %s13, 2
      // Predicated region
      $region57: #{mlp_complex_forward.1} parent=55 // pred_check
        %p1898 = pneg %p194
      $region58: #{mlp_complex_forward.1} parent=55 // pred_check_branch
        %1900 = sbr.rel (%p1898) target = $region60
      $region59: #{mlp_complex_forward.1} parent=55 // pred_region
        %s1901 = smul.u32 64, %s19
        %p1902 = scmp.lt.s32.totalorder %s1901, 127
        %s1903 = scalar_select %p1902, %s1901, 127
        %s1904 = smul.addr %s1903, 8
        %s1905 = scalar_lea.vmem %s7, %s1904
      $region60: #{mlp_complex_forward.1} parent=55 // pred_fallthru
        _
    $region56: #{mlp_complex_forward.1} parent=5 // pred_fallthru
      _
  $region6: #{mlp_complex_forward.1} parent=0 // loop_footer
    %s17 = sadd.s32 1, %s13
  $region7: #{mlp_complex_forward.1} parent=0 // loop_footer_branch
    %12 = sbr.rel target = $region3
  $region8: #{mlp_complex_forward.1} parent=0 // loop_exit
    _

</llo_original>
